<compile_context>
chip_gen: v6e
topology: v6e:2x2x1
jax: 0.10.0
libtpu: 0.0.40
codegen_flags: <defaults>
</compile_context>

<pallas_src>
import functools
import math

import jax
import jax.numpy as jnp
from jax import lax
from jax.experimental import pallas as pl
from jax.experimental.pallas import tpu as pltpu

DIM = 128          # dim / fourier_dim / data_dim in the PyTorch module
HALF = DIM // 2

# Take the single-step (fully resident) path when the estimated VMEM footprint
# is under this budget; otherwise stream W2 in K-tiles.
_SINGLE_STEP_VMEM_BUDGET = 16 * 1024 * 1024

_GELU_C = math.sqrt(2.0 / math.pi)


def _gelu_tanh(x):
    # tanh-approximate GELU: tanh goes to the EUP (otherwise-idle VLIW slot);
    # accuracy delta vs torch's exact GELU is << the bf16/int8 weight error.
    return 0.5 * x * (1.0 + jnp.tanh(_GELU_C * (x + 0.044715 * (x * x * x))))


def _gelu_exact(x):
    # torch.nn.GELU() default (erf) -- used only in the pure-JAX reference.
    return 0.5 * x * (1.0 + lax.erf(x * (1.0 / math.sqrt(2.0))))


# ----------------------------------------------------------------------------
# Kernel 1: single-step path (everything resident in VMEM, no grid).
# ----------------------------------------------------------------------------
def _net_single_kernel(x_ref, freqs_ref, phase_ref, w1_ref, b1_ref,
                       w2_ref, w2s_ref, b2_ref, w3_ref, out_ref):
    """One-shot fused Net forward.

    x_ref:     (D*Bp, 1) f32   xi.T flattened: row d*Bp+b holds xi[b, d]
    freqs_ref: (1, 128)  f32   frequency table tiled twice
    phase_ref: (1, 128)  f32   0 for the sin half, pi/2 for the cos half
    w1_ref:    (128,128) bf16  Linear(128,128), (in,out) layout; b1 (1,128) f32
    w2_ref:    (D,128,H) int8  K-tiles of Linear(H,H); w2s (1,H) f32 col scales
    b2_ref:    (1, H)    f32
    w3_ref:    (H, 128)  bf16  Linear(H,D) zero-padded to 128 lanes
    out_ref:   (Bp, 128) f32   partial output (b3 added in the wrapper)
    """
    D, _, H = w2_ref.shape
    Bp = out_ref.shape[0]

    # Sinusoidal embedding at full 128-lane width:
    # concat([sin(x*f), cos(x*f)]) == sin(x*f + phase).  (VPU broadcast.)
    ang = x_ref[...] * freqs_ref[...] + phase_ref[...]          # (D*Bp, 128)
    emb = jnp.sin(ang).astype(jnp.bfloat16)

    # Linear(128,128) + GELU -> flattened hidden rows g1[(d, b), :].
    h1 = jnp.dot(emb, w1_ref[...],
                 preferred_element_type=jnp.float32) + b1_ref[...]
    g1 = _gelu_tanh(h1).astype(jnp.bfloat16)                    # (D*Bp, 128)

    # Linear(H,H): Flatten is equivalent to sum_d g1_d @ W2[d*128:(d+1)*128, :].
    acc = jnp.zeros((Bp, H), jnp.float32)
    for d in range(D):                                          # static unroll
        acc = acc + jnp.dot(g1[d * Bp:(d + 1) * Bp, :],
                            w2_ref[d].astype(jnp.bfloat16),     # int8 -> bf16
                            preferred_element_type=jnp.float32)
    h2 = _gelu_tanh(acc * w2s_ref[...] + b2_ref[...]).astype(jnp.bfloat16)

    # Linear(H, D), lane-padded to 128.
    out_ref[...] = jnp.dot(h2, w3_ref[...], preferred_element_type=jnp.float32)


# ----------------------------------------------------------------------------
# Kernel 2: tiled path -- W2 streamed in (128, H/n_split) tiles.
#   grid = (n_split, D):
#     axis 0 "parallel": column split of W2 / row split of W3 (v7x dual-TC)
#     axis 1 "arbitrary": reduction over the D K-tiles of W2
# ----------------------------------------------------------------------------
def _net_tiled_kernel(x_ref, freqs_ref, phase_ref, w1_ref, b1_ref,
                      w2_ref, w2s_ref, b2_ref, w3_ref, out_ref, acc_ref):
    k = pl.program_id(1)

    @pl.when(k == 0)
    def _init():
        acc_ref[...] = jnp.zeros_like(acc_ref)

    # Embedding + Linear(128,128) + GELU for data-dim k (tiny; hidden under the
    # W2-tile DMA of the neighbouring steps).
    ang = x_ref[...] * freqs_ref[...] + phase_ref[...]          # (Bp,1)*(1,128)
    emb = jnp.sin(ang).astype(jnp.bfloat16)
    h1 = jnp.dot(emb, w1_ref[...],
                 preferred_element_type=jnp.float32) + b1_ref[...]
    g1 = _gelu_tanh(h1).astype(jnp.bfloat16)                    # (Bp, 128)

    # Accumulate this K-slice of Linear(H,H) (int8 tile dequantized to bf16).
    acc_ref[...] += jnp.dot(g1, w2_ref[...].astype(jnp.bfloat16),
                            preferred_element_type=jnp.float32)

    @pl.when(k == pl.num_programs(1) - 1)
    def _finalize():
        h2 = _gelu_tanh(acc_ref[...] * w2s_ref[...]
                        + b2_ref[...]).astype(jnp.bfloat16)
        out_ref[...] = jnp.dot(h2, w3_ref[...],
                               preferred_element_type=jnp.float32)


# ----------------------------------------------------------------------------
# Wrapper
# ----------------------------------------------------------------------------
def _cost_estimate(Bp, D, H):
    flops = 2 * D * Bp * DIM * DIM + 2 * Bp * H * H + 2 * Bp * H * DIM
    transcendentals = 3 * Bp * H                      # sin + 2 x gelu(tanh)
    bytes_accessed = (H * H                           # W2 int8
                      + H * DIM * 2                   # W3 bf16
                      + DIM * DIM * 2                 # W1 bf16
                      + 3 * H * 4                     # b2, W2 scale
                      + D * Bp * 4 + Bp * DIM * 4)    # in / out
    return pl.CostEstimate(flops=int(flops),
                           transcendentals=int(transcendentals),
                           bytes_accessed=int(bytes_accessed))


def net_forward(xi, kp, *, n_split=1, force_tiled=False):
    """Pallas implementation of Net.forward. xi: (B, D) f32 -> (B, D) f32."""
    B, D = xi.shape
    H = D * DIM

    # Pad batch to a sublane multiple so every (B, .) tile is unmasked.
    Bp = max(8, ((B + 7) // 8) * 8)
    xi_p = jnp.zeros((Bp, D), jnp.float32).at[:B].set(xi.astype(jnp.float32))
    xT = xi_p.T                                       # (D, Bp) -- tiny layout op

    cost = _cost_estimate(Bp, D, H)

    resident = (H * H                                 # W2 int8
                + H * DIM * 2                         # W3 bf16
                + Bp * H * 4                          # f32 Linear2 accumulator
                + D * Bp * DIM * 2                    # g1 bf16
                + DIM * DIM * 2 + 12 * H + 4096)      # w1 + biases/scales + misc

    if (not force_tiled) and resident <= _SINGLE_STEP_VMEM_BUDGET:
        # ---- single-step path: W2 resident, no grid overhead ----
        out = pl.pallas_call(
            _net_single_kernel,
            out_shape=jax.ShapeDtypeStruct((Bp, DIM), jnp.float32),
            compiler_params=pltpu.CompilerParams(
                vmem_limit_bytes=int(min(2 * resident + (8 << 20), 64 << 20))),
            cost_estimate=cost,
        )(xT.reshape(D * Bp, 1), kp["freqs"], kp["phase"], kp["w1"], kp["b1"],
          kp["w2q"], kp["w2s"], kp["b2"], kp["w3p"])
    else:
        # ---- tiled path: stream W2 K-tiles; split columns across n_split ----
        if D % n_split != 0:
            n_split = 1
        Hn = H // n_split
        vmem_need = (2 * DIM * Hn                     # double-buffered W2 tile (int8)
                     + 2 * Hn * DIM * 2               # W3 row block (x2 buffers)
                     + 4 * Hn * 4                     # b2 + scale blocks (x2)
                     + Bp * Hn * 4                    # accumulator scratch
                     + 2 * DIM * DIM * 2              # w1
                     + 8 * DIM * 4                    # freqs/phase/b1
                     + 2 * Bp * DIM * 4 + 4 * Bp      # out + x slice
                     + 4096)
        out_parts = pl.pallas_call(
            _net_tiled_kernel,
            out_shape=jax.ShapeDtypeStruct((n_split, Bp, DIM), jnp.float32),
            grid=(n_split, D),
            in_specs=[
                pl.BlockSpec((None, Bp, 1), lambda n, k: (k, 0, 0)),    # x dim k
                pl.BlockSpec((1, DIM), lambda n, k: (0, 0)),            # freqs
                pl.BlockSpec((1, DIM), lambda n, k: (0, 0)),            # phase
                pl.BlockSpec((DIM, DIM), lambda n, k: (0, 0)),          # w1
                pl.BlockSpec((1, DIM), lambda n, k: (0, 0)),            # b1
                pl.BlockSpec((None, DIM, Hn), lambda n, k: (k, 0, n)),  # w2 tile
                pl.BlockSpec((1, Hn), lambda n, k: (0, n)),             # w2 scale
                pl.BlockSpec((1, Hn), lambda n, k: (0, n)),             # b2
                pl.BlockSpec((Hn, DIM), lambda n, k: (n, 0)),           # w3 rows
            ],
            out_specs=pl.BlockSpec((None, Bp, DIM), lambda n, k: (n, 0, 0)),
            scratch_shapes=[pltpu.VMEM((Bp, Hn), jnp.float32)],
            compiler_params=pltpu.CompilerParams(
                dimension_semantics=("parallel", "arbitrary"),
                vmem_limit_bytes=int(min(vmem_need + (8 << 20), 64 << 20))),
            cost_estimate=cost,
        )(xT.reshape(D, Bp, 1), kp["freqs"], kp["phase"], kp["w1"], kp["b1"],
          kp["w2q"], kp["w2s"], kp["b2"], kp["w3p"])
        out = jnp.sum(out_parts, axis=0)              # combine n_split partials

    return (out + kp["b3p"])[:B, :D]


# ----------------------------------------------------------------------------
# Parameters
# ----------------------------------------------------------------------------
def init_params(key, num_data_dim):
    """Deterministic init mimicking torch.nn.Linear defaults U(+-1/sqrt(fan_in))."""
    D = num_data_dim
    H = D * DIM
    k1, k2, k3, k4, k5, k6 = jax.random.split(key, 6)

    def u(k, shape, fan_in):
        bound = 1.0 / math.sqrt(fan_in)
        return jax.random.uniform(k, shape, jnp.float32, -bound, bound)

    return {
        "w1": u(k1, (DIM, DIM), DIM),     # Linear(128,128), stored (in, out)
        "b1": u(k2, (1, DIM), DIM),
        "w2": u(k3, (H, H), H),           # Linear(D*128, D*128)
        "b2": u(k4, (1, H), H),
        "w3": u(k5, (H, D), H),           # Linear(D*128, D)
        "b3": u(k6, (1, D), H),
    }


def prepare_params(params, num_data_dim):
    """One-time conversion of torch-layout params into kernel-friendly layouts."""
    D = num_data_dim
    H = D * DIM
    freqs_half = jnp.exp(jnp.arange(HALF, dtype=jnp.float32)
                         * (-math.log(10000.0) / (HALF - 1)))
    freqs128 = jnp.tile(freqs_half, 2).reshape(1, DIM)
    phase128 = jnp.concatenate(
        [jnp.zeros((HALF,), jnp.float32),
         jnp.full((HALF,), math.pi / 2.0, jnp.float32)]).reshape(1, DIM)

    # int8 per-output-column quantization of W2 (f32 accumulation in-kernel).
    w2 = params["w2"]
    w2s = jnp.maximum(jnp.max(jnp.abs(w2), axis=0, keepdims=True), 1e-12) / 127.0
    w2q = jnp.clip(jnp.round(w2 / w2s), -127.0, 127.0)
    w2q = w2q.astype(jnp.int8).reshape(D, DIM, H)     # (D, 128, H) K-tiles

    w3p = jnp.zeros((H, DIM), jnp.float32).at[:, :D].set(params["w3"])
    b3p = jnp.zeros((1, DIM), jnp.float32).at[:, :D].set(params["b3"])
    return {
        "freqs": freqs128,
        "phase": phase128,
        "w1": params["w1"].astype(jnp.bfloat16),
        "b1": params["b1"],
        "w2q": w2q,
        "w2s": w2s,
        "b2": params["b2"],
        "w3p": w3p.astype(jnp.bfloat16),
        "b3p": b3p,
    }


def net_reference(xi, params):
    """Pure-JAX f32 reference of the PyTorch module (exact erf GELU)."""
    B, D = xi.shape
    freqs = jnp.exp(jnp.arange(HALF, dtype=jnp.float32)
                    * (-math.log(10000.0) / (HALF - 1)))
    ang = xi[..., None] * freqs                                  # (B, D, 64)
    emb = jnp.concatenate([jnp.sin(ang), jnp.cos(ang)], axis=-1)  # (B, D, 128)
    h1 = emb @ params["w1"] + params["b1"]                        # (B, D, 128)
    h = _gelu_exact(h1.reshape(B, D * DIM))
    h2 = _gelu_exact(h @ params["w2"] + params["b2"])
    return h2 @ params["w3"] + params["b3"]


if __name__ == "__main__":
    B, D = 2, 4  # batch=2, num_data_dim=4 -> hidden width H = 512

    key = jax.random.PRNGKey(0)
    k_params, k_x = jax.random.split(key)
    params = init_params(k_params, D)
    kparams = prepare_params(params, D)
    xi = jax.random.normal(k_x, (B, D), dtype=jnp.float32)

    ref = net_reference(xi, params)

    # Path 1: single-step (W2 resident) -- the path this size actually takes.
    out = jax.jit(net_forward)(xi, kparams)
    jax.block_until_ready(out)
    assert out.shape == (B, D) and out.dtype == jnp.float32
    err = float(jnp.max(jnp.abs(out - ref)))
    # Loose tolerance: W2 int8, w1/w3 bf16, tanh-approx GELU (all deliberate).
    assert jnp.allclose(out, ref, rtol=5e-2, atol=5e-2), f"single-step err {err}"

    # Path 2: K-tiled / N-split kernel (the large-H path), forced at this small
    # size to validate it end to end; n_split=2 exercises the v7x dual-TC layout.
    out_t = jax.jit(functools.partial(net_forward, force_tiled=True,
                                      n_split=2))(xi, kparams)
    jax.block_until_ready(out_t)
    err_t = float(jnp.max(jnp.abs(out_t - ref)))
    assert jnp.allclose(out_t, ref, rtol=5e-2, atol=5e-2), f"tiled err {err_t}"

    print("KERNEL_OK")
</pallas_src>

<mosaic_0001>
module attributes {stable_mosaic.version = 11 : i64} {
  func.func @_net_single_kernel(%arg0: memref<32x1xf32, #tpu.memory_space<vmem>>, %arg1: memref<1x128xf32, #tpu.memory_space<vmem>>, %arg2: memref<1x128xf32, #tpu.memory_space<vmem>>, %arg3: memref<128x128xbf16, #tpu.memory_space<vmem>>, %arg4: memref<1x128xf32, #tpu.memory_space<vmem>>, %arg5: memref<4x128x512xi8, #tpu.memory_space<vmem>>, %arg6: memref<1x512xf32, #tpu.memory_space<vmem>>, %arg7: memref<1x512xf32, #tpu.memory_space<vmem>>, %arg8: memref<512x128xbf16, #tpu.memory_space<vmem>>, %arg9: memref<8x128xf32, #tpu.memory_space<vmem>>) attributes {dimension_semantics = [], scalar_prefetch = 0 : i64, scratch_operands = 0 : i64, tpu.core_type = #tpu.core_type<tc>} {
    %c0 = arith.constant 0 : index
    %c0_0 = arith.constant 0 : index
    %0 = vector.load %arg0[%c0, %c0_0] : memref<32x1xf32, #tpu.memory_space<vmem>>, vector<32x1xf32>
    %c0_1 = arith.constant 0 : index
    %c0_2 = arith.constant 0 : index
    %1 = vector.load %arg1[%c0_1, %c0_2] : memref<1x128xf32, #tpu.memory_space<vmem>>, vector<1x128xf32>
    %2 = vector.broadcast %0 : vector<32x1xf32> to vector<32x128xf32>
    %3 = vector.broadcast %1 : vector<1x128xf32> to vector<32x128xf32>
    %4 = arith.mulf %2, %3 : vector<32x128xf32>
    %c0_3 = arith.constant 0 : index
    %c0_4 = arith.constant 0 : index
    %5 = vector.load %arg2[%c0_3, %c0_4] : memref<1x128xf32, #tpu.memory_space<vmem>>, vector<1x128xf32>
    %6 = vector.broadcast %5 : vector<1x128xf32> to vector<32x128xf32>
    %7 = arith.addf %4, %6 : vector<32x128xf32>
    %8 = math.sin %7 : vector<32x128xf32>
    %9 = arith.truncf %8 : vector<32x128xf32> to vector<32x128xbf16>
    %c0_5 = arith.constant 0 : index
    %c0_6 = arith.constant 0 : index
    %10 = vector.load %arg3[%c0_5, %c0_6] : memref<128x128xbf16, #tpu.memory_space<vmem>>, vector<128x128xbf16>
    %cst = arith.constant dense<0.000000e+00> : vector<32x128xf32>
    %11 = tpu.matmul %9, %10, %cst {dimension_numbers = #tpu.dot_dimension_numbers<[1], [0], [0], [1], [0, 0, 1, 1], [], []>} : vector<32x128xbf16>, vector<128x128xbf16>, vector<32x128xf32> -> vector<32x128xf32>
    %c0_7 = arith.constant 0 : index
    %c0_8 = arith.constant 0 : index
    %12 = vector.load %arg4[%c0_7, %c0_8] : memref<1x128xf32, #tpu.memory_space<vmem>>, vector<1x128xf32>
    %13 = vector.broadcast %12 : vector<1x128xf32> to vector<32x128xf32>
    %14 = arith.addf %11, %13 : vector<32x128xf32>
    %cst_9 = arith.constant 5.000000e-01 : f32
    %15 = vector.broadcast %cst_9 : f32 to vector<32x128xf32>
    %16 = arith.mulf %15, %14 : vector<32x128xf32>
    %17 = arith.mulf %14, %14 : vector<32x128xf32>
    %18 = arith.mulf %17, %14 : vector<32x128xf32>
    %cst_10 = arith.constant 4.471500e-02 : f32
    %19 = vector.broadcast %cst_10 : f32 to vector<32x128xf32>
    %20 = arith.mulf %19, %18 : vector<32x128xf32>
    %21 = arith.addf %14, %20 : vector<32x128xf32>
    %cst_11 = arith.constant 0.797884583 : f32
    %22 = vector.broadcast %cst_11 : f32 to vector<32x128xf32>
    %23 = arith.mulf %22, %21 : vector<32x128xf32>
    %24 = math.tanh %23 : vector<32x128xf32>
    %cst_12 = arith.constant 1.000000e+00 : f32
    %25 = vector.broadcast %cst_12 : f32 to vector<32x128xf32>
    %26 = arith.addf %25, %24 : vector<32x128xf32>
    %27 = arith.mulf %16, %26 : vector<32x128xf32>
    %28 = arith.truncf %27 : vector<32x128xf32> to vector<32x128xbf16>
    %cst_13 = arith.constant 0.000000e+00 : f32
    %29 = vector.broadcast %cst_13 : f32 to vector<8x512xf32>
    %30 = vector.extract_strided_slice %28 {offsets = [0, 0], sizes = [8, 128], strides = [1, 1]} : vector<32x128xbf16> to vector<8x128xbf16>
    %c0_14 = arith.constant 0 : index
    %c0_15 = arith.constant 0 : index
    %c0_16 = arith.constant 0 : index
    %31 = vector.load %arg5[%c0_14, %c0_15, %c0_16] : memref<4x128x512xi8, #tpu.memory_space<vmem>>, vector<1x128x512xi8>
    %32 = vector.shape_cast %31 : vector<1x128x512xi8> to vector<128x512xi8>
    %33 = arith.sitofp %32 : vector<128x512xi8> to vector<128x512xbf16>
    %cst_17 = arith.constant dense<0.000000e+00> : vector<8x512xf32>
    %34 = tpu.matmul %30, %33, %cst_17 {dimension_numbers = #tpu.dot_dimension_numbers<[1], [0], [0], [1], [0, 0, 1, 1], [], []>} : vector<8x128xbf16>, vector<128x512xbf16>, vector<8x512xf32> -> vector<8x512xf32>
    %35 = arith.addf %29, %34 : vector<8x512xf32>
    %36 = vector.extract_strided_slice %28 {offsets = [8, 0], sizes = [8, 128], strides = [1, 1]} : vector<32x128xbf16> to vector<8x128xbf16>
    %c1 = arith.constant 1 : index
    %c0_18 = arith.constant 0 : index
    %c0_19 = arith.constant 0 : index
    %37 = vector.load %arg5[%c1, %c0_18, %c0_19] : memref<4x128x512xi8, #tpu.memory_space<vmem>>, vector<1x128x512xi8>
    %38 = vector.shape_cast %37 : vector<1x128x512xi8> to vector<128x512xi8>
    %39 = arith.sitofp %38 : vector<128x512xi8> to vector<128x512xbf16>
    %cst_20 = arith.constant dense<0.000000e+00> : vector<8x512xf32>
    %40 = tpu.matmul %36, %39, %cst_20 {dimension_numbers = #tpu.dot_dimension_numbers<[1], [0], [0], [1], [0, 0, 1, 1], [], []>} : vector<8x128xbf16>, vector<128x512xbf16>, vector<8x512xf32> -> vector<8x512xf32>
    %41 = arith.addf %35, %40 : vector<8x512xf32>
    %42 = vector.extract_strided_slice %28 {offsets = [16, 0], sizes = [8, 128], strides = [1, 1]} : vector<32x128xbf16> to vector<8x128xbf16>
    %c2 = arith.constant 2 : index
    %c0_21 = arith.constant 0 : index
    %c0_22 = arith.constant 0 : index
    %43 = vector.load %arg5[%c2, %c0_21, %c0_22] : memref<4x128x512xi8, #tpu.memory_space<vmem>>, vector<1x128x512xi8>
    %44 = vector.shape_cast %43 : vector<1x128x512xi8> to vector<128x512xi8>
    %45 = arith.sitofp %44 : vector<128x512xi8> to vector<128x512xbf16>
    %cst_23 = arith.constant dense<0.000000e+00> : vector<8x512xf32>
    %46 = tpu.matmul %42, %45, %cst_23 {dimension_numbers = #tpu.dot_dimension_numbers<[1], [0], [0], [1], [0, 0, 1, 1], [], []>} : vector<8x128xbf16>, vector<128x512xbf16>, vector<8x512xf32> -> vector<8x512xf32>
    %47 = arith.addf %41, %46 : vector<8x512xf32>
    %48 = vector.extract_strided_slice %28 {offsets = [24, 0], sizes = [8, 128], strides = [1, 1]} : vector<32x128xbf16> to vector<8x128xbf16>
    %c3 = arith.constant 3 : index
    %c0_24 = arith.constant 0 : index
    %c0_25 = arith.constant 0 : index
    %49 = vector.load %arg5[%c3, %c0_24, %c0_25] : memref<4x128x512xi8, #tpu.memory_space<vmem>>, vector<1x128x512xi8>
    %50 = vector.shape_cast %49 : vector<1x128x512xi8> to vector<128x512xi8>
    %51 = arith.sitofp %50 : vector<128x512xi8> to vector<128x512xbf16>
    %cst_26 = arith.constant dense<0.000000e+00> : vector<8x512xf32>
    %52 = tpu.matmul %48, %51, %cst_26 {dimension_numbers = #tpu.dot_dimension_numbers<[1], [0], [0], [1], [0, 0, 1, 1], [], []>} : vector<8x128xbf16>, vector<128x512xbf16>, vector<8x512xf32> -> vector<8x512xf32>
    %53 = arith.addf %47, %52 : vector<8x512xf32>
    %c0_27 = arith.constant 0 : index
    %c0_28 = arith.constant 0 : index
    %54 = vector.load %arg6[%c0_27, %c0_28] : memref<1x512xf32, #tpu.memory_space<vmem>>, vector<1x512xf32>
    %55 = vector.broadcast %54 : vector<1x512xf32> to vector<8x512xf32>
    %56 = arith.mulf %53, %55 : vector<8x512xf32>
    %c0_29 = arith.constant 0 : index
    %c0_30 = arith.constant 0 : index
    %57 = vector.load %arg7[%c0_29, %c0_30] : memref<1x512xf32, #tpu.memory_space<vmem>>, vector<1x512xf32>
    %58 = vector.broadcast %57 : vector<1x512xf32> to vector<8x512xf32>
    %59 = arith.addf %56, %58 : vector<8x512xf32>
    %cst_31 = arith.constant 5.000000e-01 : f32
    %60 = vector.broadcast %cst_31 : f32 to vector<8x512xf32>
    %61 = arith.mulf %60, %59 : vector<8x512xf32>
    %62 = arith.mulf %59, %59 : vector<8x512xf32>
    %63 = arith.mulf %62, %59 : vector<8x512xf32>
    %cst_32 = arith.constant 4.471500e-02 : f32
    %64 = vector.broadcast %cst_32 : f32 to vector<8x512xf32>
    %65 = arith.mulf %64, %63 : vector<8x512xf32>
    %66 = arith.addf %59, %65 : vector<8x512xf32>
    %cst_33 = arith.constant 0.797884583 : f32
    %67 = vector.broadcast %cst_33 : f32 to vector<8x512xf32>
    %68 = arith.mulf %67, %66 : vector<8x512xf32>
    %69 = math.tanh %68 : vector<8x512xf32>
    %cst_34 = arith.constant 1.000000e+00 : f32
    %70 = vector.broadcast %cst_34 : f32 to vector<8x512xf32>
    %71 = arith.addf %70, %69 : vector<8x512xf32>
    %72 = arith.mulf %61, %71 : vector<8x512xf32>
    %73 = arith.truncf %72 : vector<8x512xf32> to vector<8x512xbf16>
    %c0_35 = arith.constant 0 : index
    %c0_36 = arith.constant 0 : index
    %74 = vector.load %arg8[%c0_35, %c0_36] : memref<512x128xbf16, #tpu.memory_space<vmem>>, vector<512x128xbf16>
    %cst_37 = arith.constant dense<0.000000e+00> : vector<8x128xf32>
    %75 = tpu.matmul %73, %74, %cst_37 {dimension_numbers = #tpu.dot_dimension_numbers<[1], [0], [0], [1], [0, 0, 1, 1], [], []>} : vector<8x512xbf16>, vector<512x128xbf16>, vector<8x128xf32> -> vector<8x128xf32>
    %c0_38 = arith.constant 0 : index
    %c0_39 = arith.constant 0 : index
    %76 = vector.load %arg9[%c0_38, %c0_39] : memref<8x128xf32, #tpu.memory_space<vmem>>, vector<8x128xf32>
    tpu.vector_store %arg9[%c0_38, %c0_39], %75 {strides = array<i32>} : memref<8x128xf32, #tpu.memory_space<vmem>>, vector<8x128xf32>,
    return
  }
}

</mosaic_0001>

<llo_original>
// kernel: net_forward.1
$region0: #{net_forward.1}
  #allocation0 [shape = 'u32[]', space=smem, size = 0x4, offset = 0x4, fixed_abs, tag = 'smem constant byte address 0x4 - core index']
  #allocation1 [shape = 'u32[144,128]{1,0:T(1,128)}', space=vmem, size = 0x12000, scoped, tag = 'internal scratch']
  %s0 = inlined_call_operand.vmem [shape: f32[32,1], index: 0, kind: input, shape index: {}]
  %s1 = inlined_call_operand.vmem [shape: f32[1,128], index: 1, kind: input, shape index: {}]
  %s2 = inlined_call_operand.vmem [shape: f32[1,128], index: 2, kind: input, shape index: {}]
  %s3 = inlined_call_operand.vmem [shape: bf16[128,128], index: 3, kind: input, shape index: {}]
  %s4 = inlined_call_operand.hbm [shape: f32[1,128], index: 4, kind: input, shape index: {}]
  %s5 = inlined_call_operand.hbm [shape: s8[4,128,512], index: 5, kind: input, shape index: {}]
  %s6 = inlined_call_operand.vmem [shape: f32[1,512], index: 6, kind: input, shape index: {}]
  %s7 = inlined_call_operand.hbm [shape: f32[1,512], index: 7, kind: input, shape index: {}]
  %s8 = inlined_call_operand.hbm [shape: bf16[512,128], index: 8, kind: input, shape index: {}]
  %s9 = inlined_call_operand.vmem [shape: f32[8,128], index: 9, kind: output, shape index: {}]
  %s10 = sld [smem:[#allocation0]]
  $region62: #{net_forward.1} parent=0
    _
  %s12 = ssub.s32 1, %s10
  %s13 = scalar_select 0, %s12, %s10
  $region1: #{net_forward.1} parent=0
    #allocation2 [shape = 'u8[512]{0}', space=vmem, size = 0x400, scoped, tag = 'input window, operand 4, single buffered']
    #allocation3 [shape = 's32[1]{0}', space=sflag, size = 0x4, scoped, tag = 'scoped memory for net_forward.1']
    #allocation4 [shape = 'u8[262144]{0}', space=vmem, size = 0x40000, scoped, tag = 'input window, operand 5, single buffered']
    #allocation5 [shape = 's32[1]{0}', space=sflag, size = 0x4, scoped, tag = 'scoped memory for net_forward.1']
    #allocation6 [shape = 'u8[2048]{0}', space=vmem, size = 0x800, scoped, tag = 'input window, operand 7, single buffered']
    #allocation7 [shape = 'u8[131072]{0}', space=vmem, size = 0x20000, scoped, tag = 'input window, operand 8, single buffered']
    #allocation8 [shape = 's32[1]{0}', space=sflag, size = 0x4, scoped, tag = 'scoped memory for net_forward.1']
    %14 = vsyncpa [#allocation3], 0
    %15 = vsyncpa [#allocation5], 0
    %16 = vsyncpa [#allocation8], 0
    // Predicated region
    $region2: #{net_forward.1} parent=1 // pred_check
      _
    $region3: #{net_forward.1} parent=1 // pred_check_branch
      %18 = sbr.rel (0) target = $region5
    $region4: #{net_forward.1} parent=1 // pred_region
      _
    $region5: #{net_forward.1} parent=1 // pred_fallthru
      _
    // Predicated region
    $region6: #{net_forward.1} parent=1 // pred_check
      _
    $region7: #{net_forward.1} parent=1 // pred_check_branch
      %20 = sbr.rel (0) target = $region9
    $region8: #{net_forward.1} parent=1 // pred_region
      _
    $region9: #{net_forward.1} parent=1 // pred_fallthru
      _
    // Predicated region
    $region10: #{net_forward.1} parent=1 // pred_check
      _
    $region11: #{net_forward.1} parent=1 // pred_check_branch
      %22 = sbr.rel (0) target = $region13
    $region12: #{net_forward.1} parent=1 // pred_region
      _
    $region13: #{net_forward.1} parent=1 // pred_fallthru
      _
    // Predicated region
    $region14: #{net_forward.1} parent=1 // pred_check
      _
    $region15: #{net_forward.1} parent=1 // pred_check_branch
      %24 = sbr.rel (0) target = $region17
    $region16: #{net_forward.1} parent=1 // pred_region
      _
    $region17: #{net_forward.1} parent=1 // pred_fallthru
      _
    // Predicated region
    $region18: #{net_forward.1} parent=1 // pred_check
      _
    $region19: #{net_forward.1} parent=1 // pred_check_branch
      %26 = sbr.rel (0) target = $region21
    $region20: #{net_forward.1} parent=1 // pred_region
      %s28 = ssub.s32 16, 16
      %29 = vsyncadd [#allocation3], %s28
      %s31 = sshll.u32 [#allocation2], 4
      %s32 = int_to_ptr.vmem [resolvable:$true] %s31
      %34 = dma.hbm_to_vmem [thread:$0]  %s4, 16, %s32, [#allocation3]
    $region21: #{net_forward.1} parent=1 // pred_fallthru
      _
    // Predicated region
    $region22: #{net_forward.1} parent=1 // pred_check
      _
    $region23: #{net_forward.1} parent=1 // pred_check_branch
      %36 = sbr.rel (0) target = $region25
    $region24: #{net_forward.1} parent=1 // pred_region
      %s38 = ssub.s32 8192, 8192
      %39 = vsyncadd [#allocation5], %s38
      %s40 = sshll.u32 [#allocation4], 4
      %s41 = int_to_ptr.vmem [resolvable:$true] %s40
      %46 = dma.hbm_to_vmem [thread:$0]  %s5, 8192, %s41, [#allocation5], 512, 512, 32
    $region25: #{net_forward.1} parent=1 // pred_fallthru
      _
    // Predicated region
    $region26: #{net_forward.1} parent=1 // pred_check
      _
    $region27: #{net_forward.1} parent=1 // pred_check_branch
      %48 = sbr.rel (0) target = $region29
    $region28: #{net_forward.1} parent=1 // pred_region
      _
    $region29: #{net_forward.1} parent=1 // pred_fallthru
      _
    // Predicated region
    $region30: #{net_forward.1} parent=1 // pred_check
      _
    $region31: #{net_forward.1} parent=1 // pred_check_branch
      %50 = sbr.rel (0) target = $region33
    $region32: #{net_forward.1} parent=1 // pred_region
      %s52 = ssub.s32 64, 64
      %53 = vsyncadd [#allocation5], %s52
      %s55 = sshll.u32 [#allocation6], 4
      %s56 = int_to_ptr.vmem [resolvable:$true] %s55
      %58 = dma.hbm_to_vmem [thread:$0]  %s7, 64, %s56, [#allocation5]
    $region33: #{net_forward.1} parent=1 // pred_fallthru
      _
    // Predicated region
    $region34: #{net_forward.1} parent=1 // pred_check
      _
    $region35: #{net_forward.1} parent=1 // pred_check_branch
      %60 = sbr.rel (0) target = $region37
    $region36: #{net_forward.1} parent=1 // pred_region
      %s62 = ssub.s32 4096, 4096
      %63 = vsyncadd [#allocation8], %s62
      %s64 = sshll.u32 [#allocation7], 4
      %s65 = int_to_ptr.vmem [resolvable:$true] %s64
      %70 = dma.hbm_to_vmem [thread:$0]  %s8, 4096, %s65, [#allocation8], 64, 64, 4
    $region37: #{net_forward.1} parent=1 // pred_fallthru
      _
    // Predicated region
    $region38: #{net_forward.1} parent=1 // pred_check
      _
    $region39: #{net_forward.1} parent=1 // pred_check_branch
      %72 = sbr.rel (0) target = $region41
    $region40: #{net_forward.1} parent=1 // pred_region
      %73 = dma.done [#allocation3], 16
    $region41: #{net_forward.1} parent=1 // pred_fallthru
      _
    // Predicated region
    $region42: #{net_forward.1} parent=1 // pred_check
      _
    $region43: #{net_forward.1} parent=1 // pred_check_branch
      %75 = sbr.rel (0) target = $region45
    $region44: #{net_forward.1} parent=1 // pred_region
      %76 = dma.done [#allocation5], 8192
    $region45: #{net_forward.1} parent=1 // pred_fallthru
      _
    // Predicated region
    $region46: #{net_forward.1} parent=1 // pred_check
      _
    $region47: #{net_forward.1} parent=1 // pred_check_branch
      %78 = sbr.rel (0) target = $region49
    $region48: #{net_forward.1} parent=1 // pred_region
      %79 = dma.done [#allocation5], 64
    $region49: #{net_forward.1} parent=1 // pred_fallthru
      _
    // Predicated region
    $region50: #{net_forward.1} parent=1 // pred_check
      _
    $region51: #{net_forward.1} parent=1 // pred_check_branch
      %81 = sbr.rel (0) target = $region53
    $region52: #{net_forward.1} parent=1 // pred_region
      %82 = dma.done [#allocation8], 4096
    $region53: #{net_forward.1} parent=1 // pred_fallthru
      _
    %v84 = vld [vmem:[%s0] sm:$0xff]
    %v85 = vld [vmem:[%s0 + $0x8] sm:$0xff]
    %v86 = vld [vmem:[%s0 + $0x10] sm:$0xff]
    %v87 = vld [vmem:[%s0 + $0x18] sm:$0xff]
    %v88 = vld [vmem:[%s1] sm:$0x1]
    %90 = vset.pattern.permute.xlu0 0
    %91 = vperm.xlu0 %90, %v84
    %v92 = vpop.permute.xlu0 %91
    %95 = vset.pattern.permute.xlu0 0
    %96 = vperm.xlu0 %95, %v85
    %v97 = vpop.permute.xlu0 %96
    %100 = vset.pattern.permute.xlu0 0
    %101 = vperm.xlu0 %100, %v86
    %v102 = vpop.permute.xlu0 %101
    %105 = vset.pattern.permute.xlu0 0
    %106 = vperm.xlu0 %105, %v87
    %v107 = vpop.permute.xlu0 %106
    %v110 = vlaneseq
    %v111 = vshrl.u32 %v110, 7
    %v112 = vsub.s32 0, %v111
    %v113 = vrot.slane %v88, %v112
    %v115 = vmul.f32 %v92, %v113
    %v116 = vmul.f32 %v97, %v113
    %v117 = vmul.f32 %v102, %v113
    %v118 = vmul.f32 %v107, %v113
    %v119 = vld [vmem:[%s2] sm:$0x1]
    %v121 = vlaneseq
    %v122 = vshrl.u32 %v121, 7
    %v123 = vsub.s32 0, %v122
    %v124 = vrot.slane %v119, %v123
    %v126 = vadd.f32 %v115, %v124
    %v127 = vadd.f32 %v116, %v124
    %v128 = vadd.f32 %v117, %v124
    %v129 = vadd.f32 %v118, %v124
    %v130 = vand.u32 2147483647, %v126
    %vm131 = vcmp.le.f32.partialorder %v130, 0.7853982
    %vm132 = vcmp.lt.s32.totalorder %v126, 0
    %v133 = vand.u32 %v126, 2139095040
    %v134 = vshrl.u32 %v133, 23
    %v135 = vsub.s32 %v134, 127
    %v136 = vand.u32 2147483647, %v126
    %v137 = vand.u32 %v136, 8388607
    %v138 = vor.u32 %v137, 8388608
    %v139 = vsub.s32 0, %v138
    %v140 = vadd.s32 %v135, 1
    %vm141 = vcmp.gt.s32.totalorder %v140, 0
    %v142 = vsel %vm141, %v140, 0
    %v143 = vshrl.u32 %v142, 5
    %v144 = vand.u32 %v142, 31
    %v145 = vsub.s32 32, %v144
    %v146 = vshrl.u32 683565275, %v145
    %v147 = vshll.u32 683565275, %v144
    %v148 = vshrl.u32 2475754826, %v145
    %v149 = vor.u32 %v147, %v148
    %v150 = vshll.u32 2475754826, %v144
    %v151 = vshrl.u32 2131351028, %v145
    %v152 = vor.u32 %v150, %v151
    %v153 = vshll.u32 2131351028, %v144
    %v154 = vshrl.u32 2102212464, %v145
    %v155 = vor.u32 %v153, %v154
    %v156 = vshll.u32 2102212464, %v144
    %v157 = vshrl.u32 920167782, %v145
    %v158 = vor.u32 %v156, %v157
    %v159 = vshll.u32 920167782, %v144
    %v160 = vshrl.u32 1326507024, %v145
    %v161 = vor.u32 %v159, %v160
    %vm162 = vcmp.lt.s32.totalorder %v143, 1
    %vm163 = vcmp.lt.s32.totalorder %v143, 2
    %vm164 = vcmp.lt.s32.totalorder %v143, 3
    %vm165 = vcmp.lt.s32.totalorder %v143, 4
    %v166 = vsel %vm162, %v146, %v149
    %v167 = vsel %vm165, %v155, 2102212464
    %v168 = vsel %vm164, %v152, %v167
    %v169 = vsel %vm163, %v166, %v168
    %v170 = vsel %vm162, %v149, %v152
    %v171 = vsel %vm165, %v158, 920167782
    %v172 = vsel %vm164, %v155, %v171
    %v173 = vsel %vm163, %v170, %v172
    %v174 = vsel %vm162, %v152, %v155
    %v175 = vsel %vm165, %v161, 1326507024
    %v176 = vsel %vm164, %v158, %v175
    %v177 = vsel %vm163, %v174, %v176
    %v178 = vshll.u32 %v138, 8
    %v179 = vmul.u32.u64.compose %v178, %v177
    %v180 = vextract.low.u32 %v179
    %v181 = vextract.high.u32 %v179
    %v182 = vmul.u32.u64.compose %v178, %v173
    %v183 = vextract.low.u32 %v182
    %v184 = vextract.high.u32 %v182
    %v185 = vmul.u32 %v178, %v169
    %v186 = vadd.s32 %v181, %v183
    %vm187 = vc.u32 %v181, %v183
    %v188 = vadd.s32 %v184, 1
    %v189 = vsel %vm187, %v188, %v184
    %v190 = vadd.s32 %v185, %v189
    %v191 = vadd.s32 %v190, 536870912
    %v192 = vshrl.u32 %v191, 30
    %v193 = vshll.u32 %v192, 30
    %v194 = vsub.s32 %v190, %v193
    %vm195 = vcmp.lt.s32.totalorder %v194, 0
    %v196 = vsub.s32 0, %v194
    %v197 = vsel %vm195, %v196, %v194
    %v198 = vclz %v197
    %v199 = vsub.s32 %v198, 2
    %vm200 = vcmp.gt.s32.totalorder 0, %v199
    %v201 = vsel %vm200, 0, %v199
    %v202 = vsub.s32 32, %v201
    %v203 = vshll.u32 %v194, %v201
    %v204 = vshrl.u32 %v186, %v202
    %v205 = vor.u32 %v203, %v204
    %v206 = vsub.s32 4294967266, %v201
    %v207 = vadd.s32 %v206, 127
    %v208 = vshll.u32 %v207, 23
    %v209 = vor.u32 4788187, %v208
    %v210 = vand.u32 2147483647, %v209
    %v212 = vcvt.s32.f32 %v205
    %v213 = vmul.f32 %v212, %v210
    %v214 = vxor.u32 %v213, 2147483648
    %v215 = vsel %vm132, %v214, %v213
    %v216 = vsub.s32 4, %v192
    %v217 = vsel %vm132, %v216, %v192
    %v218 = vsel %vm131, %v126, %v215
    %v219 = vsel %vm131, 0, %v217
    %v220 = vcosq.f32.pop %v218
    %v221 = vsinq.f32.pop %v218
    %vm222 = vweird.f32 %v126
    %v223 = vadd.s32 %v219, 3
    %v224 = vand.u32 %v223, 3
    %vm225 = vcmp.lt.s32.totalorder %v224, 2
    %vm226 = vcmp.eq.s32.totalorder %v224, 0
    %v227 = vxor.u32 %v221, 2147483648
    %v228 = vsel %vm226, %v220, %v227
    %vm229 = vcmp.eq.s32.totalorder %v224, 2
    %v230 = vxor.u32 %v220, 2147483648
    %v231 = vsel %vm229, %v230, %v221
    %v232 = vsel %vm225, %v228, %v231
    %v233 = vsel %vm222, nan, %v232
    %v234 = vand.u32 2147483647, %v127
    %vm235 = vcmp.le.f32.partialorder %v234, 0.7853982
    %vm236 = vcmp.lt.s32.totalorder %v127, 0
    %v237 = vand.u32 %v127, 2139095040
    %v238 = vshrl.u32 %v237, 23
    %v239 = vsub.s32 %v238, 127
    %v240 = vand.u32 2147483647, %v127
    %v241 = vand.u32 %v240, 8388607
    %v242 = vor.u32 %v241, 8388608
    %v243 = vsub.s32 0, %v242
    %v244 = vadd.s32 %v239, 1
    %vm245 = vcmp.gt.s32.totalorder %v244, 0
    %v246 = vsel %vm245, %v244, 0
    %v247 = vshrl.u32 %v246, 5
    %v248 = vand.u32 %v246, 31
    %v249 = vsub.s32 32, %v248
    %v250 = vshrl.u32 683565275, %v249
    %v251 = vshll.u32 683565275, %v248
    %v252 = vshrl.u32 2475754826, %v249
    %v253 = vor.u32 %v251, %v252
    %v254 = vshll.u32 2475754826, %v248
    %v255 = vshrl.u32 2131351028, %v249
    %v256 = vor.u32 %v254, %v255
    %v257 = vshll.u32 2131351028, %v248
    %v258 = vshrl.u32 2102212464, %v249
    %v259 = vor.u32 %v257, %v258
    %v260 = vshll.u32 2102212464, %v248
    %v261 = vshrl.u32 920167782, %v249
    %v262 = vor.u32 %v260, %v261
    %v263 = vshll.u32 920167782, %v248
    %v264 = vshrl.u32 1326507024, %v249
    %v265 = vor.u32 %v263, %v264
    %vm266 = vcmp.lt.s32.totalorder %v247, 1
    %vm267 = vcmp.lt.s32.totalorder %v247, 2
    %vm268 = vcmp.lt.s32.totalorder %v247, 3
    %vm269 = vcmp.lt.s32.totalorder %v247, 4
    %v270 = vsel %vm266, %v250, %v253
    %v271 = vsel %vm269, %v259, 2102212464
    %v272 = vsel %vm268, %v256, %v271
    %v273 = vsel %vm267, %v270, %v272
    %v274 = vsel %vm266, %v253, %v256
    %v275 = vsel %vm269, %v262, 920167782
    %v276 = vsel %vm268, %v259, %v275
    %v277 = vsel %vm267, %v274, %v276
    %v278 = vsel %vm266, %v256, %v259
    %v279 = vsel %vm269, %v265, 1326507024
    %v280 = vsel %vm268, %v262, %v279
    %v281 = vsel %vm267, %v278, %v280
    %v282 = vshll.u32 %v242, 8
    %v283 = vmul.u32.u64.compose %v282, %v281
    %v284 = vextract.low.u32 %v283
    %v285 = vextract.high.u32 %v283
    %v286 = vmul.u32.u64.compose %v282, %v277
    %v287 = vextract.low.u32 %v286
    %v288 = vextract.high.u32 %v286
    %v289 = vmul.u32 %v282, %v273
    %v290 = vadd.s32 %v285, %v287
    %vm291 = vc.u32 %v285, %v287
    %v292 = vadd.s32 %v288, 1
    %v293 = vsel %vm291, %v292, %v288
    %v294 = vadd.s32 %v289, %v293
    %v295 = vadd.s32 %v294, 536870912
    %v296 = vshrl.u32 %v295, 30
    %v297 = vshll.u32 %v296, 30
    %v298 = vsub.s32 %v294, %v297
    %vm299 = vcmp.lt.s32.totalorder %v298, 0
    %v300 = vsub.s32 0, %v298
    %v301 = vsel %vm299, %v300, %v298
    %v302 = vclz %v301
    %v303 = vsub.s32 %v302, 2
    %vm304 = vcmp.gt.s32.totalorder 0, %v303
    %v305 = vsel %vm304, 0, %v303
    %v306 = vsub.s32 32, %v305
    %v307 = vshll.u32 %v298, %v305
    %v308 = vshrl.u32 %v290, %v306
    %v309 = vor.u32 %v307, %v308
    %v310 = vsub.s32 4294967266, %v305
    %v311 = vadd.s32 %v310, 127
    %v312 = vshll.u32 %v311, 23
    %v313 = vor.u32 4788187, %v312
    %v314 = vand.u32 2147483647, %v313
    %v316 = vcvt.s32.f32 %v309
    %v317 = vmul.f32 %v316, %v314
    %v318 = vxor.u32 %v317, 2147483648
    %v319 = vsel %vm236, %v318, %v317
    %v320 = vsub.s32 4, %v296
    %v321 = vsel %vm236, %v320, %v296
    %v322 = vsel %vm235, %v127, %v319
    %v323 = vsel %vm235, 0, %v321
    %v324 = vcosq.f32.pop %v322
    %v325 = vsinq.f32.pop %v322
    %vm326 = vweird.f32 %v127
    %v327 = vadd.s32 %v323, 3
    %v328 = vand.u32 %v327, 3
    %vm329 = vcmp.lt.s32.totalorder %v328, 2
    %vm330 = vcmp.eq.s32.totalorder %v328, 0
    %v331 = vxor.u32 %v325, 2147483648
    %v332 = vsel %vm330, %v324, %v331
    %vm333 = vcmp.eq.s32.totalorder %v328, 2
    %v334 = vxor.u32 %v324, 2147483648
    %v335 = vsel %vm333, %v334, %v325
    %v336 = vsel %vm329, %v332, %v335
    %v337 = vsel %vm326, nan, %v336
    %v338 = vand.u32 2147483647, %v128
    %vm339 = vcmp.le.f32.partialorder %v338, 0.7853982
    %vm340 = vcmp.lt.s32.totalorder %v128, 0
    %v341 = vand.u32 %v128, 2139095040
    %v342 = vshrl.u32 %v341, 23
    %v343 = vsub.s32 %v342, 127
    %v344 = vand.u32 2147483647, %v128
    %v345 = vand.u32 %v344, 8388607
    %v346 = vor.u32 %v345, 8388608
    %v347 = vsub.s32 0, %v346
    %v348 = vadd.s32 %v343, 1
    %vm349 = vcmp.gt.s32.totalorder %v348, 0
    %v350 = vsel %vm349, %v348, 0
    %v351 = vshrl.u32 %v350, 5
    %v352 = vand.u32 %v350, 31
    %v353 = vsub.s32 32, %v352
    %v354 = vshrl.u32 683565275, %v353
    %v355 = vshll.u32 683565275, %v352
    %v356 = vshrl.u32 2475754826, %v353
    %v357 = vor.u32 %v355, %v356
    %v358 = vshll.u32 2475754826, %v352
    %v359 = vshrl.u32 2131351028, %v353
    %v360 = vor.u32 %v358, %v359
    %v361 = vshll.u32 2131351028, %v352
    %v362 = vshrl.u32 2102212464, %v353
    %v363 = vor.u32 %v361, %v362
    %v364 = vshll.u32 2102212464, %v352
    %v365 = vshrl.u32 920167782, %v353
    %v366 = vor.u32 %v364, %v365
    %v367 = vshll.u32 920167782, %v352
    %v368 = vshrl.u32 1326507024, %v353
    %v369 = vor.u32 %v367, %v368
    %vm370 = vcmp.lt.s32.totalorder %v351, 1
    %vm371 = vcmp.lt.s32.totalorder %v351, 2
    %vm372 = vcmp.lt.s32.totalorder %v351, 3
    %vm373 = vcmp.lt.s32.totalorder %v351, 4
    %v374 = vsel %vm370, %v354, %v357
    %v375 = vsel %vm373, %v363, 2102212464
    %v376 = vsel %vm372, %v360, %v375
    %v377 = vsel %vm371, %v374, %v376
    %v378 = vsel %vm370, %v357, %v360
    %v379 = vsel %vm373, %v366, 920167782
    %v380 = vsel %vm372, %v363, %v379
    %v381 = vsel %vm371, %v378, %v380
    %v382 = vsel %vm370, %v360, %v363
    %v383 = vsel %vm373, %v369, 1326507024
    %v384 = vsel %vm372, %v366, %v383
    %v385 = vsel %vm371, %v382, %v384
    %v386 = vshll.u32 %v346, 8
    %v387 = vmul.u32.u64.compose %v386, %v385
    %v388 = vextract.low.u32 %v387
    %v389 = vextract.high.u32 %v387
    %v390 = vmul.u32.u64.compose %v386, %v381
    %v391 = vextract.low.u32 %v390
    %v392 = vextract.high.u32 %v390
    %v393 = vmul.u32 %v386, %v377
    %v394 = vadd.s32 %v389, %v391
    %vm395 = vc.u32 %v389, %v391
    %v396 = vadd.s32 %v392, 1
    %v397 = vsel %vm395, %v396, %v392
    %v398 = vadd.s32 %v393, %v397
    %v399 = vadd.s32 %v398, 536870912
    %v400 = vshrl.u32 %v399, 30
    %v401 = vshll.u32 %v400, 30
    %v402 = vsub.s32 %v398, %v401
    %vm403 = vcmp.lt.s32.totalorder %v402, 0
    %v404 = vsub.s32 0, %v402
    %v405 = vsel %vm403, %v404, %v402
    %v406 = vclz %v405
    %v407 = vsub.s32 %v406, 2
    %vm408 = vcmp.gt.s32.totalorder 0, %v407
    %v409 = vsel %vm408, 0, %v407
    %v410 = vsub.s32 32, %v409
    %v411 = vshll.u32 %v402, %v409
    %v412 = vshrl.u32 %v394, %v410
    %v413 = vor.u32 %v411, %v412
    %v414 = vsub.s32 4294967266, %v409
    %v415 = vadd.s32 %v414, 127
    %v416 = vshll.u32 %v415, 23
    %v417 = vor.u32 4788187, %v416
    %v418 = vand.u32 2147483647, %v417
    %v420 = vcvt.s32.f32 %v413
    %v421 = vmul.f32 %v420, %v418
    %v422 = vxor.u32 %v421, 2147483648
    %v423 = vsel %vm340, %v422, %v421
    %v424 = vsub.s32 4, %v400
    %v425 = vsel %vm340, %v424, %v400
    %v426 = vsel %vm339, %v128, %v423
    %v427 = vsel %vm339, 0, %v425
    %v428 = vcosq.f32.pop %v426
    %v429 = vsinq.f32.pop %v426
    %vm430 = vweird.f32 %v128
    %v431 = vadd.s32 %v427, 3
    %v432 = vand.u32 %v431, 3
    %vm433 = vcmp.lt.s32.totalorder %v432, 2
    %vm434 = vcmp.eq.s32.totalorder %v432, 0
    %v435 = vxor.u32 %v429, 2147483648
    %v436 = vsel %vm434, %v428, %v435
    %vm437 = vcmp.eq.s32.totalorder %v432, 2
    %v438 = vxor.u32 %v428, 2147483648
    %v439 = vsel %vm437, %v438, %v429
    %v440 = vsel %vm433, %v436, %v439
    %v441 = vsel %vm430, nan, %v440
    %v442 = vand.u32 2147483647, %v129
    %vm443 = vcmp.le.f32.partialorder %v442, 0.7853982
    %vm444 = vcmp.lt.s32.totalorder %v129, 0
    %v445 = vand.u32 %v129, 2139095040
    %v446 = vshrl.u32 %v445, 23
    %v447 = vsub.s32 %v446, 127
    %v448 = vand.u32 2147483647, %v129
    %v449 = vand.u32 %v448, 8388607
    %v450 = vor.u32 %v449, 8388608
    %v451 = vsub.s32 0, %v450
    %v452 = vadd.s32 %v447, 1
    %vm453 = vcmp.gt.s32.totalorder %v452, 0
    %v454 = vsel %vm453, %v452, 0
    %v455 = vshrl.u32 %v454, 5
    %v456 = vand.u32 %v454, 31
    %v457 = vsub.s32 32, %v456
    %v458 = vshrl.u32 683565275, %v457
    %v459 = vshll.u32 683565275, %v456
    %v460 = vshrl.u32 2475754826, %v457
    %v461 = vor.u32 %v459, %v460
    %v462 = vshll.u32 2475754826, %v456
    %v463 = vshrl.u32 2131351028, %v457
    %v464 = vor.u32 %v462, %v463
    %v465 = vshll.u32 2131351028, %v456
    %v466 = vshrl.u32 2102212464, %v457
    %v467 = vor.u32 %v465, %v466
    %v468 = vshll.u32 2102212464, %v456
    %v469 = vshrl.u32 920167782, %v457
    %v470 = vor.u32 %v468, %v469
    %v471 = vshll.u32 920167782, %v456
    %v472 = vshrl.u32 1326507024, %v457
    %v473 = vor.u32 %v471, %v472
    %vm474 = vcmp.lt.s32.totalorder %v455, 1
    %vm475 = vcmp.lt.s32.totalorder %v455, 2
    %vm476 = vcmp.lt.s32.totalorder %v455, 3
    %vm477 = vcmp.lt.s32.totalorder %v455, 4
    %v478 = vsel %vm474, %v458, %v461
    %v479 = vsel %vm477, %v467, 2102212464
    %v480 = vsel %vm476, %v464, %v479
    %v481 = vsel %vm475, %v478, %v480
    %v482 = vsel %vm474, %v461, %v464
    %v483 = vsel %vm477, %v470, 920167782
    %v484 = vsel %vm476, %v467, %v483
    %v485 = vsel %vm475, %v482, %v484
    %v486 = vsel %vm474, %v464, %v467
    %v487 = vsel %vm477, %v473, 1326507024
    %v488 = vsel %vm476, %v470, %v487
    %v489 = vsel %vm475, %v486, %v488
    %v490 = vshll.u32 %v450, 8
    %v491 = vmul.u32.u64.compose %v490, %v489
    %v492 = vextract.low.u32 %v491
    %v493 = vextract.high.u32 %v491
    %v494 = vmul.u32.u64.compose %v490, %v485
    %v495 = vextract.low.u32 %v494
    %v496 = vextract.high.u32 %v494
    %v497 = vmul.u32 %v490, %v481
    %v498 = vadd.s32 %v493, %v495
    %vm499 = vc.u32 %v493, %v495
    %v500 = vadd.s32 %v496, 1
    %v501 = vsel %vm499, %v500, %v496
    %v502 = vadd.s32 %v497, %v501
    %v503 = vadd.s32 %v502, 536870912
    %v504 = vshrl.u32 %v503, 30
    %v505 = vshll.u32 %v504, 30
    %v506 = vsub.s32 %v502, %v505
    %vm507 = vcmp.lt.s32.totalorder %v506, 0
    %v508 = vsub.s32 0, %v506
    %v509 = vsel %vm507, %v508, %v506
    %v510 = vclz %v509
    %v511 = vsub.s32 %v510, 2
    %vm512 = vcmp.gt.s32.totalorder 0, %v511
    %v513 = vsel %vm512, 0, %v511
    %v514 = vsub.s32 32, %v513
    %v515 = vshll.u32 %v506, %v513
    %v516 = vshrl.u32 %v498, %v514
    %v517 = vor.u32 %v515, %v516
    %v518 = vsub.s32 4294967266, %v513
    %v519 = vadd.s32 %v518, 127
    %v520 = vshll.u32 %v519, 23
    %v521 = vor.u32 4788187, %v520
    %v522 = vand.u32 2147483647, %v521
    %v524 = vcvt.s32.f32 %v517
    %v525 = vmul.f32 %v524, %v522
    %v526 = vxor.u32 %v525, 2147483648
    %v527 = vsel %vm444, %v526, %v525
    %v528 = vsub.s32 4, %v504
    %v529 = vsel %vm444, %v528, %v504
    %v530 = vsel %vm443, %v129, %v527
    %v531 = vsel %vm443, 0, %v529
    %v532 = vcosq.f32.pop %v530
    %v533 = vsinq.f32.pop %v530
    %vm534 = vweird.f32 %v129
    %v535 = vadd.s32 %v531, 3
    %v536 = vand.u32 %v535, 3
    %vm537 = vcmp.lt.s32.totalorder %v536, 2
    %vm538 = vcmp.eq.s32.totalorder %v536, 0
    %v539 = vxor.u32 %v533, 2147483648
    %v540 = vsel %vm538, %v532, %v539
    %vm541 = vcmp.eq.s32.totalorder %v536, 2
    %v542 = vxor.u32 %v532, 2147483648
    %v543 = vsel %vm541, %v542, %v533
    %v544 = vsel %vm537, %v540, %v543
    %v545 = vsel %vm534, nan, %v544
    %v546 = vpack.c.bf16 %v337, %v233
    %v547 = vpack.c.bf16 %v545, %v441
    %v548 = vld [vmem:[%s3] sm:$0xf]
    %v549 = vld [vmem:[%s3 + $0x4] sm:$0xf]
    %v550 = vld [vmem:[%s3 + $0x8] sm:$0xf]
    %v551 = vld [vmem:[%s3 + $0xc] sm:$0xf]
    %v552 = vld [vmem:[%s3 + $0x10] sm:$0xf]
    %v553 = vld [vmem:[%s3 + $0x14] sm:$0xf]
    %v554 = vld [vmem:[%s3 + $0x18] sm:$0xf]
    %v555 = vld [vmem:[%s3 + $0x1c] sm:$0xf]
    %v556 = vld [vmem:[%s3 + $0x20] sm:$0xf]
    %v557 = vld [vmem:[%s3 + $0x24] sm:$0xf]
    %v558 = vld [vmem:[%s3 + $0x28] sm:$0xf]
    %v559 = vld [vmem:[%s3 + $0x2c] sm:$0xf]
    %v560 = vld [vmem:[%s3 + $0x30] sm:$0xf]
    %v561 = vld [vmem:[%s3 + $0x34] sm:$0xf]
    %v562 = vld [vmem:[%s3 + $0x38] sm:$0xf]
    %v563 = vld [vmem:[%s3 + $0x3c] sm:$0xf]
    %v564 = vld [vmem:[#allocation2] sm:$0x1]
    %v566 = vlaneseq
    %v567 = vshrl.u32 %v566, 7
    %v568 = vsub.s32 0, %v567
    %v569 = vrot.slane %v564, %v568
    %v587 = vunpack.c.l.b16 %v548
    %v588 = vunpack.c.l.b16 %v549
    %v589 = vunpack.c.l.b16 %v550
    %v590 = vunpack.c.l.b16 %v551
    %v591 = vunpack.c.l.b16 %v552
    %v592 = vunpack.c.l.b16 %v553
    %v593 = vunpack.c.l.b16 %v554
    %v594 = vunpack.c.l.b16 %v555
    %v595 = vunpack.c.l.b16 %v556
    %v596 = vunpack.c.l.b16 %v557
    %v597 = vunpack.c.l.b16 %v558
    %v598 = vunpack.c.l.b16 %v559
    %v599 = vunpack.c.l.b16 %v560
    %v600 = vunpack.c.l.b16 %v561
    %v601 = vunpack.c.l.b16 %v562
    %v602 = vunpack.c.l.b16 %v563
    %v603 = vpack.c.b16 %v588, %v587
    %v604 = vpack.c.b16 %v590, %v589
    %v605 = vpack.c.b16 %v592, %v591
    %v606 = vpack.c.b16 %v594, %v593
    %v607 = vpack.c.b16 %v596, %v595
    %v608 = vpack.c.b16 %v598, %v597
    %v609 = vpack.c.b16 %v600, %v599
    %v610 = vpack.c.b16 %v602, %v601
    %619 = vmatprep.subr.bf16.mxu0 0
    %620 = vmatpush1.bf16.msra.mxu0 %v610
    %621 = vmatprep.subr.bf16.mxu0 0
    %622 = vmatpush1.bf16.msra.mxu0 %v609
    %623 = vmatprep.subr.bf16.mxu0 0
    %624 = vmatpush1.bf16.msra.mxu0 %v608
    %625 = vmatprep.subr.bf16.mxu0 0
    %626 = vmatpush1.bf16.msra.mxu0 %v607
    %627 = vmatprep.subr.bf16.mxu0 0
    %628 = vmatpush1.bf16.msra.mxu0 %v606
    %629 = vmatprep.subr.bf16.mxu0 0
    %630 = vmatpush1.bf16.msra.mxu0 %v605
    %631 = vmatprep.subr.bf16.mxu0 0
    %632 = vmatpush1.bf16.msra.mxu0 %v604
    %633 = vmatprep.subr.bf16.mxu0 0
    %634 = vmatpush1.bf16.msra.mxu0 %v603
    %635 = vmatprep.subr.bf16.mxu0 0
    %636 = vmatpush2.bf16.msra.mxu0 0
    %637 = vmatprep.subr.bf16.mxu0 0
    %638 = vmatpush2.bf16.msra.mxu0 0
    %639 = vmatprep.subr.bf16.mxu0 0
    %640 = vmatpush2.bf16.msra.mxu0 0
    %641 = vmatprep.subr.bf16.mxu0 0
    %642 = vmatpush2.bf16.msra.mxu0 0
    %643 = vmatprep.subr.bf16.mxu0 0
    %644 = vmatpush2.bf16.msra.mxu0 0
    %645 = vmatprep.subr.bf16.mxu0 0
    %646 = vmatpush2.bf16.msra.mxu0 0
    %647 = vmatprep.subr.bf16.mxu0 0
    %648 = vmatpush2.bf16.msra.mxu0 0
    %649 = vmatprep.subr.bf16.mxu0 0
    %650 = vmatpush2.bf16.msra.mxu0 0
    %651 = vmatprep.mubr.bf16.mxu0 0
    %652 = vmatmul.mubr.bf16.gmra.mxu0 %v546
    %v653 = vpop.f32.mrf.mxu0
    %v654 = vadd.f32 %v569, %v653
    %v655 = vpop.f32.mrf.mxu0
    %v656 = vpop.f32.mrf.mxu0
    %v657 = vadd.f32 %v569, %v656
    %v658 = vpop.f32.mrf.mxu0
    %659 = vmatprep.mubr.bf16.mxu0 0
    %660 = vmatmul.mubr.bf16.gmra.mxu0 %v547
    %v661 = vpop.f32.mrf.mxu0
    %v662 = vadd.f32 %v569, %v661
    %v663 = vpop.f32.mrf.mxu0
    %v664 = vpop.f32.mrf.mxu0
    %v665 = vadd.f32 %v569, %v664
    %v666 = vpop.f32.mrf.mxu0
    %667 = vdwg.mxu0
    %v668 = vmul.f32 %v654, 0.5
    %v669 = vmul.f32 %v657, 0.5
    %v670 = vmul.f32 %v662, 0.5
    %v671 = vmul.f32 %v665, 0.5
    %v672 = vmul.f32 %v654, %v654
    %v673 = vmul.f32 %v657, %v657
    %v674 = vmul.f32 %v662, %v662
    %v675 = vmul.f32 %v665, %v665
    %v676 = vmul.f32 %v672, %v654
    %v677 = vmul.f32 %v673, %v657
    %v678 = vmul.f32 %v674, %v662
    %v679 = vmul.f32 %v675, %v665
    %v680 = vmul.f32 %v676, 0.044715
    %v681 = vmul.f32 %v677, 0.044715
    %v682 = vmul.f32 %v678, 0.044715
    %v683 = vmul.f32 %v679, 0.044715
    %v684 = vadd.f32 %v654, %v680
    %v685 = vadd.f32 %v657, %v681
    %v686 = vadd.f32 %v662, %v682
    %v687 = vadd.f32 %v665, %v683
    %v688 = vmul.f32 %v684, 0.7978846
    %v689 = vmul.f32 %v685, 0.7978846
    %v690 = vmul.f32 %v686, 0.7978846
    %v691 = vmul.f32 %v687, 0.7978846
    %v692 = vtanh.pop %v688
    %v693 = vtanh.pop %v689
    %v694 = vtanh.pop %v690
    %v695 = vtanh.pop %v691
    %v696 = vadd.f32 %v692, 1.0
    %v697 = vadd.f32 %v693, 1.0
    %v698 = vadd.f32 %v694, 1.0
    %v699 = vadd.f32 %v695, 1.0
    %v700 = vmul.f32 %v668, %v696
    %v701 = vmul.f32 %v669, %v697
    %v702 = vmul.f32 %v670, %v698
    %v703 = vmul.f32 %v671, %v699
    %v704 = vpack.c.bf16 %v701, %v700
    %v705 = vpack.c.bf16 %v703, %v702
    %v706 = vld [vmem:[#allocation4] sm:$0xff]
    %v707 = vld [vmem:[#allocation4 + $0x8] sm:$0xff]
    %v708 = vld [vmem:[#allocation4 + $0x10] sm:$0xff]
    %v709 = vld [vmem:[#allocation4 + $0x18] sm:$0xff]
    %v710 = vld [vmem:[#allocation4 + $0x20] sm:$0xff]
    %v711 = vld [vmem:[#allocation4 + $0x28] sm:$0xff]
    %v712 = vld [vmem:[#allocation4 + $0x30] sm:$0xff]
    %v713 = vld [vmem:[#allocation4 + $0x38] sm:$0xff]
    %v714 = vld [vmem:[#allocation4 + $0x40] sm:$0xff]
    %v715 = vld [vmem:[#allocation4 + $0x48] sm:$0xff]
    %v716 = vld [vmem:[#allocation4 + $0x50] sm:$0xff]
    %v717 = vld [vmem:[#allocation4 + $0x58] sm:$0xff]
    %v718 = vld [vmem:[#allocation4 + $0x60] sm:$0xff]
    %v719 = vld [vmem:[#allocation4 + $0x68] sm:$0xff]
    %v720 = vld [vmem:[#allocation4 + $0x70] sm:$0xff]
    %v721 = vld [vmem:[#allocation4 + $0x78] sm:$0xff]
    %v722 = vunpack.c.l.s8.bf16 %v706
    %v723 = vunpack.c.l.s8.bf16 %v707
    %v724 = vunpack.c.l.s8.bf16 %v708
    %v725 = vunpack.c.l.s8.bf16 %v709
    %v726 = vunpack.c.h.s8.bf16 %v706
    %v727 = vunpack.c.h.s8.bf16 %v707
    %v728 = vunpack.c.h.s8.bf16 %v708
    %v729 = vunpack.c.h.s8.bf16 %v709
    %v730 = vunpack.c.l.s8.bf16 %v710
    %v731 = vunpack.c.l.s8.bf16 %v711
    %v732 = vunpack.c.l.s8.bf16 %v712
    %v733 = vunpack.c.l.s8.bf16 %v713
    %v734 = vunpack.c.h.s8.bf16 %v710
    %v735 = vunpack.c.h.s8.bf16 %v711
    %v736 = vunpack.c.h.s8.bf16 %v712
    %v737 = vunpack.c.h.s8.bf16 %v713
    %v738 = vunpack.c.l.s8.bf16 %v714
    %v739 = vunpack.c.l.s8.bf16 %v715
    %v740 = vunpack.c.l.s8.bf16 %v716
    %v741 = vunpack.c.l.s8.bf16 %v717
    %v742 = vunpack.c.h.s8.bf16 %v714
    %v743 = vunpack.c.h.s8.bf16 %v715
    %v744 = vunpack.c.h.s8.bf16 %v716
    %v745 = vunpack.c.h.s8.bf16 %v717
    %v746 = vunpack.c.l.s8.bf16 %v718
    %v747 = vunpack.c.l.s8.bf16 %v719
    %v748 = vunpack.c.l.s8.bf16 %v720
    %v749 = vunpack.c.l.s8.bf16 %v721
    %v750 = vunpack.c.h.s8.bf16 %v718
    %v751 = vunpack.c.h.s8.bf16 %v719
    %v752 = vunpack.c.h.s8.bf16 %v720
    %v753 = vunpack.c.h.s8.bf16 %v721
    %s754 = scalar_lea.vmem [#allocation4], 128
    %v755 = vld [vmem:[%s754] sm:$0xff]
    %v756 = vld [vmem:[%s754 + $0x8] sm:$0xff]
    %v757 = vld [vmem:[%s754 + $0x10] sm:$0xff]
    %v758 = vld [vmem:[%s754 + $0x18] sm:$0xff]
    %v759 = vld [vmem:[%s754 + $0x20] sm:$0xff]
    %v760 = vld [vmem:[%s754 + $0x28] sm:$0xff]
    %v761 = vld [vmem:[%s754 + $0x30] sm:$0xff]
    %v762 = vld [vmem:[%s754 + $0x38] sm:$0xff]
    %v763 = vld [vmem:[%s754 + $0x40] sm:$0xff]
    %v764 = vld [vmem:[%s754 + $0x48] sm:$0xff]
    %v765 = vld [vmem:[%s754 + $0x50] sm:$0xff]
    %v766 = vld [vmem:[%s754 + $0x58] sm:$0xff]
    %v767 = vld [vmem:[%s754 + $0x60] sm:$0xff]
    %v768 = vld [vmem:[%s754 + $0x68] sm:$0xff]
    %v769 = vld [vmem:[%s754 + $0x70] sm:$0xff]
    %v770 = vld [vmem:[%s754 + $0x78] sm:$0xff]
    %v771 = vunpack.c.l.s8.bf16 %v755
    %v772 = vunpack.c.l.s8.bf16 %v756
    %v773 = vunpack.c.l.s8.bf16 %v757
    %v774 = vunpack.c.l.s8.bf16 %v758
    %v775 = vunpack.c.h.s8.bf16 %v755
    %v776 = vunpack.c.h.s8.bf16 %v756
    %v777 = vunpack.c.h.s8.bf16 %v757
    %v778 = vunpack.c.h.s8.bf16 %v758
    %v779 = vunpack.c.l.s8.bf16 %v759
    %v780 = vunpack.c.l.s8.bf16 %v760
    %v781 = vunpack.c.l.s8.bf16 %v761
    %v782 = vunpack.c.l.s8.bf16 %v762
    %v783 = vunpack.c.h.s8.bf16 %v759
    %v784 = vunpack.c.h.s8.bf16 %v760
    %v785 = vunpack.c.h.s8.bf16 %v761
    %v786 = vunpack.c.h.s8.bf16 %v762
    %v787 = vunpack.c.l.s8.bf16 %v763
    %v788 = vunpack.c.l.s8.bf16 %v764
    %v789 = vunpack.c.l.s8.bf16 %v765
    %v790 = vunpack.c.l.s8.bf16 %v766
    %v791 = vunpack.c.h.s8.bf16 %v763
    %v792 = vunpack.c.h.s8.bf16 %v764
    %v793 = vunpack.c.h.s8.bf16 %v765
    %v794 = vunpack.c.h.s8.bf16 %v766
    %v795 = vunpack.c.l.s8.bf16 %v767
    %v796 = vunpack.c.l.s8.bf16 %v768
    %v797 = vunpack.c.l.s8.bf16 %v769
    %v798 = vunpack.c.l.s8.bf16 %v770
    %v799 = vunpack.c.h.s8.bf16 %v767
    %v800 = vunpack.c.h.s8.bf16 %v768
    %v801 = vunpack.c.h.s8.bf16 %v769
    %v802 = vunpack.c.h.s8.bf16 %v770
    %v804 = vrot.slane %v704, 4
    %806 = vmatprep.subr.bf16.mxu0 %v800
    %807 = vmatpush1.bf16.msra.mxu0 %v799
    %808 = vmatprep.subr.bf16.mxu0 %v796
    %809 = vmatpush1.bf16.msra.mxu0 %v795
    %810 = vmatprep.subr.bf16.mxu0 %v792
    %811 = vmatpush1.bf16.msra.mxu0 %v791
    %812 = vmatprep.subr.bf16.mxu0 %v788
    %813 = vmatpush1.bf16.msra.mxu0 %v787
    %814 = vmatprep.subr.bf16.mxu0 %v784
    %815 = vmatpush1.bf16.msra.mxu0 %v783
    %816 = vmatprep.subr.bf16.mxu0 %v780
    %817 = vmatpush1.bf16.msra.mxu0 %v779
    %818 = vmatprep.subr.bf16.mxu0 %v776
    %819 = vmatpush1.bf16.msra.mxu0 %v775
    %820 = vmatprep.subr.bf16.mxu0 %v772
    %821 = vmatpush1.bf16.msra.mxu0 %v771
    %822 = vmatprep.subr.bf16.mxu0 0
    %823 = vmatpush2.bf16.msra.mxu0 0
    %824 = vmatprep.subr.bf16.mxu0 0
    %825 = vmatpush2.bf16.msra.mxu0 0
    %826 = vmatprep.subr.bf16.mxu0 0
    %827 = vmatpush2.bf16.msra.mxu0 0
    %828 = vmatprep.subr.bf16.mxu0 0
    %829 = vmatpush2.bf16.msra.mxu0 0
    %830 = vmatprep.subr.bf16.mxu0 0
    %831 = vmatpush2.bf16.msra.mxu0 0
    %832 = vmatprep.subr.bf16.mxu0 0
    %833 = vmatpush2.bf16.msra.mxu0 0
    %834 = vmatprep.subr.bf16.mxu0 0
    %835 = vmatpush2.bf16.msra.mxu0 0
    %836 = vmatprep.subr.bf16.mxu0 0
    %837 = vmatpush2.bf16.msra.mxu0 0
    %838 = vmatprep.mubr.bf16.mxu0 0
    %839 = vmatmul.mubr.bf16.gmra.mxu0 %v804
    %v840 = vpop.f32.mrf.mxu0
    %v841 = vadd.f32 0.0, %v840
    %v842 = vpop.f32.mrf.mxu0
    %v843 = vadd.f32 0.0, %v842
    %v844 = vpop.f32.mrf.mxu0
    %v845 = vpop.f32.mrf.mxu0
    %846 = vdwg.mxu0
    %847 = vmatprep.subr.bf16.mxu0 %v802
    %848 = vmatpush1.bf16.msra.mxu0 %v801
    %849 = vmatprep.subr.bf16.mxu0 %v798
    %850 = vmatpush1.bf16.msra.mxu0 %v797
    %851 = vmatprep.subr.bf16.mxu0 %v794
    %852 = vmatpush1.bf16.msra.mxu0 %v793
    %853 = vmatprep.subr.bf16.mxu0 %v790
    %854 = vmatpush1.bf16.msra.mxu0 %v789
    %855 = vmatprep.subr.bf16.mxu0 %v786
    %856 = vmatpush1.bf16.msra.mxu0 %v785
    %857 = vmatprep.subr.bf16.mxu0 %v782
    %858 = vmatpush1.bf16.msra.mxu0 %v781
    %859 = vmatprep.subr.bf16.mxu0 %v778
    %860 = vmatpush1.bf16.msra.mxu0 %v777
    %861 = vmatprep.subr.bf16.mxu0 %v774
    %862 = vmatpush1.bf16.msra.mxu0 %v773
    %863 = vmatprep.subr.bf16.mxu0 0
    %864 = vmatpush2.bf16.msra.mxu0 0
    %865 = vmatprep.subr.bf16.mxu0 0
    %866 = vmatpush2.bf16.msra.mxu0 0
    %867 = vmatprep.subr.bf16.mxu0 0
    %868 = vmatpush2.bf16.msra.mxu0 0
    %869 = vmatprep.subr.bf16.mxu0 0
    %870 = vmatpush2.bf16.msra.mxu0 0
    %871 = vmatprep.subr.bf16.mxu0 0
    %872 = vmatpush2.bf16.msra.mxu0 0
    %873 = vmatprep.subr.bf16.mxu0 0
    %874 = vmatpush2.bf16.msra.mxu0 0
    %875 = vmatprep.subr.bf16.mxu0 0
    %876 = vmatpush2.bf16.msra.mxu0 0
    %877 = vmatprep.subr.bf16.mxu0 0
    %878 = vmatpush2.bf16.msra.mxu0 0
    %879 = vmatprep.mubr.bf16.mxu0 0
    %880 = vmatmul.mubr.bf16.gmra.mxu0 %v804
    %v881 = vpop.f32.mrf.mxu0
    %v882 = vadd.f32 0.0, %v881
    %v883 = vpop.f32.mrf.mxu0
    %v884 = vadd.f32 0.0, %v883
    %v885 = vpop.f32.mrf.mxu0
    %v886 = vpop.f32.mrf.mxu0
    %887 = vdwg.mxu0
    %888 = vmatprep.subr.bf16.mxu0 %v751
    %889 = vmatpush1.bf16.msra.mxu0 %v750
    %890 = vmatprep.subr.bf16.mxu0 %v747
    %891 = vmatpush1.bf16.msra.mxu0 %v746
    %892 = vmatprep.subr.bf16.mxu0 %v743
    %893 = vmatpush1.bf16.msra.mxu0 %v742
    %894 = vmatprep.subr.bf16.mxu0 %v739
    %895 = vmatpush1.bf16.msra.mxu0 %v738
    %896 = vmatprep.subr.bf16.mxu0 %v735
    %897 = vmatpush1.bf16.msra.mxu0 %v734
    %898 = vmatprep.subr.bf16.mxu0 %v731
    %899 = vmatpush1.bf16.msra.mxu0 %v730
    %900 = vmatprep.subr.bf16.mxu0 %v727
    %901 = vmatpush1.bf16.msra.mxu0 %v726
    %902 = vmatprep.subr.bf16.mxu0 %v723
    %903 = vmatpush1.bf16.msra.mxu0 %v722
    %904 = vmatprep.subr.bf16.mxu0 0
    %905 = vmatpush2.bf16.msra.mxu0 0
    %906 = vmatprep.subr.bf16.mxu0 0
    %907 = vmatpush2.bf16.msra.mxu0 0
    %908 = vmatprep.subr.bf16.mxu0 0
    %909 = vmatpush2.bf16.msra.mxu0 0
    %910 = vmatprep.subr.bf16.mxu0 0
    %911 = vmatpush2.bf16.msra.mxu0 0
    %912 = vmatprep.subr.bf16.mxu0 0
    %913 = vmatpush2.bf16.msra.mxu0 0
    %914 = vmatprep.subr.bf16.mxu0 0
    %915 = vmatpush2.bf16.msra.mxu0 0
    %916 = vmatprep.subr.bf16.mxu0 0
    %917 = vmatpush2.bf16.msra.mxu0 0
    %918 = vmatprep.subr.bf16.mxu0 0
    %919 = vmatpush2.bf16.msra.mxu0 0
    %920 = vmatprep.mubr.bf16.mxu0 0
    %921 = vmatmul.mubr.bf16.gmra.mxu0 %v704
    %v922 = vpop.f32.mrf.mxu0
    %v923 = vadd.f32 %v841, %v922
    %v924 = vpop.f32.mrf.mxu0
    %v925 = vadd.f32 %v843, %v924
    %v926 = vpop.f32.mrf.mxu0
    %v927 = vpop.f32.mrf.mxu0
    %928 = vdwg.mxu0
    %929 = vmatprep.subr.bf16.mxu0 %v753
    %930 = vmatpush1.bf16.msra.mxu0 %v752
    %931 = vmatprep.subr.bf16.mxu0 %v749
    %932 = vmatpush1.bf16.msra.mxu0 %v748
    %933 = vmatprep.subr.bf16.mxu0 %v745
    %934 = vmatpush1.bf16.msra.mxu0 %v744
    %935 = vmatprep.subr.bf16.mxu0 %v741
    %936 = vmatpush1.bf16.msra.mxu0 %v740
    %937 = vmatprep.subr.bf16.mxu0 %v737
    %938 = vmatpush1.bf16.msra.mxu0 %v736
    %939 = vmatprep.subr.bf16.mxu0 %v733
    %940 = vmatpush1.bf16.msra.mxu0 %v732
    %941 = vmatprep.subr.bf16.mxu0 %v729
    %942 = vmatpush1.bf16.msra.mxu0 %v728
    %943 = vmatprep.subr.bf16.mxu0 %v725
    %944 = vmatpush1.bf16.msra.mxu0 %v724
    %945 = vmatprep.subr.bf16.mxu0 0
    %946 = vmatpush2.bf16.msra.mxu0 0
    %947 = vmatprep.subr.bf16.mxu0 0
    %948 = vmatpush2.bf16.msra.mxu0 0
    %949 = vmatprep.subr.bf16.mxu0 0
    %950 = vmatpush2.bf16.msra.mxu0 0
    %951 = vmatprep.subr.bf16.mxu0 0
    %952 = vmatpush2.bf16.msra.mxu0 0
    %953 = vmatprep.subr.bf16.mxu0 0
    %954 = vmatpush2.bf16.msra.mxu0 0
    %955 = vmatprep.subr.bf16.mxu0 0
    %956 = vmatpush2.bf16.msra.mxu0 0
    %957 = vmatprep.subr.bf16.mxu0 0
    %958 = vmatpush2.bf16.msra.mxu0 0
    %959 = vmatprep.subr.bf16.mxu0 0
    %960 = vmatpush2.bf16.msra.mxu0 0
    %961 = vmatprep.mubr.bf16.mxu0 0
    %962 = vmatmul.mubr.bf16.gmra.mxu0 %v704
    %v963 = vpop.f32.mrf.mxu0
    %v964 = vadd.f32 %v882, %v963
    %v965 = vpop.f32.mrf.mxu0
    %v966 = vadd.f32 %v884, %v965
    %v967 = vpop.f32.mrf.mxu0
    %v968 = vpop.f32.mrf.mxu0
    %969 = vdwg.mxu0
    %s970 = scalar_lea.vmem [#allocation4], 256
    %v971 = vld [vmem:[%s970] sm:$0xff]
    %v972 = vld [vmem:[%s970 + $0x8] sm:$0xff]
    %v973 = vld [vmem:[%s970 + $0x10] sm:$0xff]
    %v974 = vld [vmem:[%s970 + $0x18] sm:$0xff]
    %v975 = vld [vmem:[%s970 + $0x20] sm:$0xff]
    %v976 = vld [vmem:[%s970 + $0x28] sm:$0xff]
    %v977 = vld [vmem:[%s970 + $0x30] sm:$0xff]
    %v978 = vld [vmem:[%s970 + $0x38] sm:$0xff]
    %v979 = vld [vmem:[%s970 + $0x40] sm:$0xff]
    %v980 = vld [vmem:[%s970 + $0x48] sm:$0xff]
    %v981 = vld [vmem:[%s970 + $0x50] sm:$0xff]
    %v982 = vld [vmem:[%s970 + $0x58] sm:$0xff]
    %v983 = vld [vmem:[%s970 + $0x60] sm:$0xff]
    %v984 = vld [vmem:[%s970 + $0x68] sm:$0xff]
    %v985 = vld [vmem:[%s970 + $0x70] sm:$0xff]
    %v986 = vld [vmem:[%s970 + $0x78] sm:$0xff]
    %v987 = vunpack.c.l.s8.bf16 %v971
    %v988 = vunpack.c.l.s8.bf16 %v972
    %v989 = vunpack.c.l.s8.bf16 %v973
    %v990 = vunpack.c.l.s8.bf16 %v974
    %v991 = vunpack.c.h.s8.bf16 %v971
    %v992 = vunpack.c.h.s8.bf16 %v972
    %v993 = vunpack.c.h.s8.bf16 %v973
    %v994 = vunpack.c.h.s8.bf16 %v974
    %v995 = vunpack.c.l.s8.bf16 %v975
    %v996 = vunpack.c.l.s8.bf16 %v976
    %v997 = vunpack.c.l.s8.bf16 %v977
    %v998 = vunpack.c.l.s8.bf16 %v978
    %v999 = vunpack.c.h.s8.bf16 %v975
    %v1000 = vunpack.c.h.s8.bf16 %v976
    %v1001 = vunpack.c.h.s8.bf16 %v977
    %v1002 = vunpack.c.h.s8.bf16 %v978
    %v1003 = vunpack.c.l.s8.bf16 %v979
    %v1004 = vunpack.c.l.s8.bf16 %v980
    %v1005 = vunpack.c.l.s8.bf16 %v981
    %v1006 = vunpack.c.l.s8.bf16 %v982
    %v1007 = vunpack.c.h.s8.bf16 %v979
    %v1008 = vunpack.c.h.s8.bf16 %v980
    %v1009 = vunpack.c.h.s8.bf16 %v981
    %v1010 = vunpack.c.h.s8.bf16 %v982
    %v1011 = vunpack.c.l.s8.bf16 %v983
    %v1012 = vunpack.c.l.s8.bf16 %v984
    %v1013 = vunpack.c.l.s8.bf16 %v985
    %v1014 = vunpack.c.l.s8.bf16 %v986
    %v1015 = vunpack.c.h.s8.bf16 %v983
    %v1016 = vunpack.c.h.s8.bf16 %v984
    %v1017 = vunpack.c.h.s8.bf16 %v985
    %v1018 = vunpack.c.h.s8.bf16 %v986
    %1019 = vmatprep.subr.bf16.mxu0 %v1016
    %1020 = vmatpush1.bf16.msra.mxu0 %v1015
    %1021 = vmatprep.subr.bf16.mxu0 %v1012
    %1022 = vmatpush1.bf16.msra.mxu0 %v1011
    %1023 = vmatprep.subr.bf16.mxu0 %v1008
    %1024 = vmatpush1.bf16.msra.mxu0 %v1007
    %1025 = vmatprep.subr.bf16.mxu0 %v1004
    %1026 = vmatpush1.bf16.msra.mxu0 %v1003
    %1027 = vmatprep.subr.bf16.mxu0 %v1000
    %1028 = vmatpush1.bf16.msra.mxu0 %v999
    %1029 = vmatprep.subr.bf16.mxu0 %v996
    %1030 = vmatpush1.bf16.msra.mxu0 %v995
    %1031 = vmatprep.subr.bf16.mxu0 %v992
    %1032 = vmatpush1.bf16.msra.mxu0 %v991
    %1033 = vmatprep.subr.bf16.mxu0 %v988
    %1034 = vmatpush1.bf16.msra.mxu0 %v987
    %1035 = vmatprep.subr.bf16.mxu0 0
    %1036 = vmatpush2.bf16.msra.mxu0 0
    %1037 = vmatprep.subr.bf16.mxu0 0
    %1038 = vmatpush2.bf16.msra.mxu0 0
    %1039 = vmatprep.subr.bf16.mxu0 0
    %1040 = vmatpush2.bf16.msra.mxu0 0
    %1041 = vmatprep.subr.bf16.mxu0 0
    %1042 = vmatpush2.bf16.msra.mxu0 0
    %1043 = vmatprep.subr.bf16.mxu0 0
    %1044 = vmatpush2.bf16.msra.mxu0 0
    %1045 = vmatprep.subr.bf16.mxu0 0
    %1046 = vmatpush2.bf16.msra.mxu0 0
    %1047 = vmatprep.subr.bf16.mxu0 0
    %1048 = vmatpush2.bf16.msra.mxu0 0
    %1049 = vmatprep.subr.bf16.mxu0 0
    %1050 = vmatpush2.bf16.msra.mxu0 0
    %1051 = vmatprep.mubr.bf16.mxu0 0
    %1052 = vmatmul.mubr.bf16.gmra.mxu0 %v705
    %v1053 = vpop.f32.mrf.mxu0
    %v1054 = vadd.f32 0.0, %v1053
    %v1055 = vpop.f32.mrf.mxu0
    %v1056 = vadd.f32 0.0, %v1055
    %v1057 = vpop.f32.mrf.mxu0
    %v1058 = vpop.f32.mrf.mxu0
    %1059 = vdwg.mxu0
    %1060 = vmatprep.subr.bf16.mxu0 %v1018
    %1061 = vmatpush1.bf16.msra.mxu0 %v1017
    %1062 = vmatprep.subr.bf16.mxu0 %v1014
    %1063 = vmatpush1.bf16.msra.mxu0 %v1013
    %1064 = vmatprep.subr.bf16.mxu0 %v1010
    %1065 = vmatpush1.bf16.msra.mxu0 %v1009
    %1066 = vmatprep.subr.bf16.mxu0 %v1006
    %1067 = vmatpush1.bf16.msra.mxu0 %v1005
    %1068 = vmatprep.subr.bf16.mxu0 %v1002
    %1069 = vmatpush1.bf16.msra.mxu0 %v1001
    %1070 = vmatprep.subr.bf16.mxu0 %v998
    %1071 = vmatpush1.bf16.msra.mxu0 %v997
    %1072 = vmatprep.subr.bf16.mxu0 %v994
    %1073 = vmatpush1.bf16.msra.mxu0 %v993
    %1074 = vmatprep.subr.bf16.mxu0 %v990
    %1075 = vmatpush1.bf16.msra.mxu0 %v989
    %1076 = vmatprep.subr.bf16.mxu0 0
    %1077 = vmatpush2.bf16.msra.mxu0 0
    %1078 = vmatprep.subr.bf16.mxu0 0
    %1079 = vmatpush2.bf16.msra.mxu0 0
    %1080 = vmatprep.subr.bf16.mxu0 0
    %1081 = vmatpush2.bf16.msra.mxu0 0
    %1082 = vmatprep.subr.bf16.mxu0 0
    %1083 = vmatpush2.bf16.msra.mxu0 0
    %1084 = vmatprep.subr.bf16.mxu0 0
    %1085 = vmatpush2.bf16.msra.mxu0 0
    %1086 = vmatprep.subr.bf16.mxu0 0
    %1087 = vmatpush2.bf16.msra.mxu0 0
    %1088 = vmatprep.subr.bf16.mxu0 0
    %1089 = vmatpush2.bf16.msra.mxu0 0
    %1090 = vmatprep.subr.bf16.mxu0 0
    %1091 = vmatpush2.bf16.msra.mxu0 0
    %1092 = vmatprep.mubr.bf16.mxu0 0
    %1093 = vmatmul.mubr.bf16.gmra.mxu0 %v705
    %v1094 = vpop.f32.mrf.mxu0
    %v1095 = vadd.f32 0.0, %v1094
    %v1096 = vpop.f32.mrf.mxu0
    %v1097 = vadd.f32 0.0, %v1096
    %v1098 = vpop.f32.mrf.mxu0
    %v1099 = vpop.f32.mrf.mxu0
    %1100 = vdwg.mxu0
    %v1101 = vadd.f32 %v923, %v1054
    %v1102 = vadd.f32 %v925, %v1056
    %v1103 = vadd.f32 %v964, %v1095
    %v1104 = vadd.f32 %v966, %v1097
    %s1105 = scalar_lea.vmem [#allocation4], 384
    %v1106 = vld [vmem:[%s1105] sm:$0xff]
    %v1107 = vld [vmem:[%s1105 + $0x8] sm:$0xff]
    %v1108 = vld [vmem:[%s1105 + $0x10] sm:$0xff]
    %v1109 = vld [vmem:[%s1105 + $0x18] sm:$0xff]
    %v1110 = vld [vmem:[%s1105 + $0x20] sm:$0xff]
    %v1111 = vld [vmem:[%s1105 + $0x28] sm:$0xff]
    %v1112 = vld [vmem:[%s1105 + $0x30] sm:$0xff]
    %v1113 = vld [vmem:[%s1105 + $0x38] sm:$0xff]
    %v1114 = vld [vmem:[%s1105 + $0x40] sm:$0xff]
    %v1115 = vld [vmem:[%s1105 + $0x48] sm:$0xff]
    %v1116 = vld [vmem:[%s1105 + $0x50] sm:$0xff]
    %v1117 = vld [vmem:[%s1105 + $0x58] sm:$0xff]
    %v1118 = vld [vmem:[%s1105 + $0x60] sm:$0xff]
    %v1119 = vld [vmem:[%s1105 + $0x68] sm:$0xff]
    %v1120 = vld [vmem:[%s1105 + $0x70] sm:$0xff]
    %v1121 = vld [vmem:[%s1105 + $0x78] sm:$0xff]
    %v1122 = vunpack.c.l.s8.bf16 %v1106
    %v1123 = vunpack.c.l.s8.bf16 %v1107
    %v1124 = vunpack.c.l.s8.bf16 %v1108
    %v1125 = vunpack.c.l.s8.bf16 %v1109
    %v1126 = vunpack.c.h.s8.bf16 %v1106
    %v1127 = vunpack.c.h.s8.bf16 %v1107
    %v1128 = vunpack.c.h.s8.bf16 %v1108
    %v1129 = vunpack.c.h.s8.bf16 %v1109
    %v1130 = vunpack.c.l.s8.bf16 %v1110
    %v1131 = vunpack.c.l.s8.bf16 %v1111
    %v1132 = vunpack.c.l.s8.bf16 %v1112
    %v1133 = vunpack.c.l.s8.bf16 %v1113
    %v1134 = vunpack.c.h.s8.bf16 %v1110
    %v1135 = vunpack.c.h.s8.bf16 %v1111
    %v1136 = vunpack.c.h.s8.bf16 %v1112
    %v1137 = vunpack.c.h.s8.bf16 %v1113
    %v1138 = vunpack.c.l.s8.bf16 %v1114
    %v1139 = vunpack.c.l.s8.bf16 %v1115
    %v1140 = vunpack.c.l.s8.bf16 %v1116
    %v1141 = vunpack.c.l.s8.bf16 %v1117
    %v1142 = vunpack.c.h.s8.bf16 %v1114
    %v1143 = vunpack.c.h.s8.bf16 %v1115
    %v1144 = vunpack.c.h.s8.bf16 %v1116
    %v1145 = vunpack.c.h.s8.bf16 %v1117
    %v1146 = vunpack.c.l.s8.bf16 %v1118
    %v1147 = vunpack.c.l.s8.bf16 %v1119
    %v1148 = vunpack.c.l.s8.bf16 %v1120
    %v1149 = vunpack.c.l.s8.bf16 %v1121
    %v1150 = vunpack.c.h.s8.bf16 %v1118
    %v1151 = vunpack.c.h.s8.bf16 %v1119
    %v1152 = vunpack.c.h.s8.bf16 %v1120
    %v1153 = vunpack.c.h.s8.bf16 %v1121
    %v1155 = vrot.slane %v705, 4
    %1157 = vmatprep.subr.bf16.mxu0 %v1151
    %1158 = vmatpush1.bf16.msra.mxu0 %v1150
    %1159 = vmatprep.subr.bf16.mxu0 %v1147
    %1160 = vmatpush1.bf16.msra.mxu0 %v1146
    %1161 = vmatprep.subr.bf16.mxu0 %v1143
    %1162 = vmatpush1.bf16.msra.mxu0 %v1142
    %1163 = vmatprep.subr.bf16.mxu0 %v1139
    %1164 = vmatpush1.bf16.msra.mxu0 %v1138
    %1165 = vmatprep.subr.bf16.mxu0 %v1135
    %1166 = vmatpush1.bf16.msra.mxu0 %v1134
    %1167 = vmatprep.subr.bf16.mxu0 %v1131
    %1168 = vmatpush1.bf16.msra.mxu0 %v1130
    %1169 = vmatprep.subr.bf16.mxu0 %v1127
    %1170 = vmatpush1.bf16.msra.mxu0 %v1126
    %1171 = vmatprep.subr.bf16.mxu0 %v1123
    %1172 = vmatpush1.bf16.msra.mxu0 %v1122
    %1173 = vmatprep.subr.bf16.mxu0 0
    %1174 = vmatpush2.bf16.msra.mxu0 0
    %1175 = vmatprep.subr.bf16.mxu0 0
    %1176 = vmatpush2.bf16.msra.mxu0 0
    %1177 = vmatprep.subr.bf16.mxu0 0
    %1178 = vmatpush2.bf16.msra.mxu0 0
    %1179 = vmatprep.subr.bf16.mxu0 0
    %1180 = vmatpush2.bf16.msra.mxu0 0
    %1181 = vmatprep.subr.bf16.mxu0 0
    %1182 = vmatpush2.bf16.msra.mxu0 0
    %1183 = vmatprep.subr.bf16.mxu0 0
    %1184 = vmatpush2.bf16.msra.mxu0 0
    %1185 = vmatprep.subr.bf16.mxu0 0
    %1186 = vmatpush2.bf16.msra.mxu0 0
    %1187 = vmatprep.subr.bf16.mxu0 0
    %1188 = vmatpush2.bf16.msra.mxu0 0
    %1189 = vmatprep.mubr.bf16.mxu0 0
    %1190 = vmatmul.mubr.bf16.gmra.mxu0 %v1155
    %v1191 = vpop.f32.mrf.mxu0
    %v1192 = vadd.f32 0.0, %v1191
    %v1193 = vpop.f32.mrf.mxu0
    %v1194 = vadd.f32 0.0, %v1193
    %v1195 = vpop.f32.mrf.mxu0
    %v1196 = vpop.f32.mrf.mxu0
    %1197 = vdwg.mxu0
    %1198 = vmatprep.subr.bf16.mxu0 %v1153
    %1199 = vmatpush1.bf16.msra.mxu0 %v1152
    %1200 = vmatprep.subr.bf16.mxu0 %v1149
    %1201 = vmatpush1.bf16.msra.mxu0 %v1148
    %1202 = vmatprep.subr.bf16.mxu0 %v1145
    %1203 = vmatpush1.bf16.msra.mxu0 %v1144
    %1204 = vmatprep.subr.bf16.mxu0 %v1141
    %1205 = vmatpush1.bf16.msra.mxu0 %v1140
    %1206 = vmatprep.subr.bf16.mxu0 %v1137
    %1207 = vmatpush1.bf16.msra.mxu0 %v1136
    %1208 = vmatprep.subr.bf16.mxu0 %v1133
    %1209 = vmatpush1.bf16.msra.mxu0 %v1132
    %1210 = vmatprep.subr.bf16.mxu0 %v1129
    %1211 = vmatpush1.bf16.msra.mxu0 %v1128
    %1212 = vmatprep.subr.bf16.mxu0 %v1125
    %1213 = vmatpush1.bf16.msra.mxu0 %v1124
    %1214 = vmatprep.subr.bf16.mxu0 0
    %1215 = vmatpush2.bf16.msra.mxu0 0
    %1216 = vmatprep.subr.bf16.mxu0 0
    %1217 = vmatpush2.bf16.msra.mxu0 0
    %1218 = vmatprep.subr.bf16.mxu0 0
    %1219 = vmatpush2.bf16.msra.mxu0 0
    %1220 = vmatprep.subr.bf16.mxu0 0
    %1221 = vmatpush2.bf16.msra.mxu0 0
    %1222 = vmatprep.subr.bf16.mxu0 0
    %1223 = vmatpush2.bf16.msra.mxu0 0
    %1224 = vmatprep.subr.bf16.mxu0 0
    %1225 = vmatpush2.bf16.msra.mxu0 0
    %1226 = vmatprep.subr.bf16.mxu0 0
    %1227 = vmatpush2.bf16.msra.mxu0 0
    %1228 = vmatprep.subr.bf16.mxu0 0
    %1229 = vmatpush2.bf16.msra.mxu0 0
    %1230 = vmatprep.mubr.bf16.mxu0 0
    %1231 = vmatmul.mubr.bf16.gmra.mxu0 %v1155
    %v1232 = vpop.f32.mrf.mxu0
    %v1233 = vadd.f32 0.0, %v1232
    %v1234 = vpop.f32.mrf.mxu0
    %v1235 = vadd.f32 0.0, %v1234
    %v1236 = vpop.f32.mrf.mxu0
    %v1237 = vpop.f32.mrf.mxu0
    %1238 = vdwg.mxu0
    %v1239 = vadd.f32 %v1101, %v1192
    %v1240 = vadd.f32 %v1102, %v1194
    %v1241 = vadd.f32 %v1103, %v1233
    %v1242 = vadd.f32 %v1104, %v1235
    %v1243 = vld [vmem:[%s6] sm:$0xf]
    %v1245 = vlaneseq
    %v1246 = vshrl.u32 %v1245, 7
    %v1247 = vsub.s32 0, %v1246
    %v1248 = vrot.slane %v1243, %v1247
    %v1249 = vlaneseq
    %v1250 = vshrl.u32 %v1249, 7
    %v1251 = vsub.s32 1, %v1250
    %v1252 = vrot.slane %v1243, %v1251
    %v1253 = vlaneseq
    %v1254 = vshrl.u32 %v1253, 7
    %v1255 = vsub.s32 2, %v1254
    %v1256 = vrot.slane %v1243, %v1255
    %v1257 = vlaneseq
    %v1258 = vshrl.u32 %v1257, 7
    %v1259 = vsub.s32 3, %v1258
    %v1260 = vrot.slane %v1243, %v1259
    %v1265 = vmul.f32 %v1239, %v1248
    %v1266 = vmul.f32 %v1240, %v1252
    %v1267 = vmul.f32 %v1241, %v1256
    %v1268 = vmul.f32 %v1242, %v1260
    %v1269 = vld [vmem:[#allocation6] sm:$0xf]
    %v1271 = vlaneseq
    %v1272 = vshrl.u32 %v1271, 7
    %v1273 = vsub.s32 0, %v1272
    %v1274 = vrot.slane %v1269, %v1273
    %v1275 = vlaneseq
    %v1276 = vshrl.u32 %v1275, 7
    %v1277 = vsub.s32 1, %v1276
    %v1278 = vrot.slane %v1269, %v1277
    %v1279 = vlaneseq
    %v1280 = vshrl.u32 %v1279, 7
    %v1281 = vsub.s32 2, %v1280
    %v1282 = vrot.slane %v1269, %v1281
    %v1283 = vlaneseq
    %v1284 = vshrl.u32 %v1283, 7
    %v1285 = vsub.s32 3, %v1284
    %v1286 = vrot.slane %v1269, %v1285
    %v1291 = vadd.f32 %v1265, %v1274
    %v1292 = vadd.f32 %v1266, %v1278
    %v1293 = vadd.f32 %v1267, %v1282
    %v1294 = vadd.f32 %v1268, %v1286
    %v1295 = vmul.f32 %v1291, 0.5
    %v1296 = vmul.f32 %v1292, 0.5
    %v1297 = vmul.f32 %v1293, 0.5
    %v1298 = vmul.f32 %v1294, 0.5
    %v1299 = vmul.f32 %v1291, %v1291
    %v1300 = vmul.f32 %v1292, %v1292
    %v1301 = vmul.f32 %v1293, %v1293
    %v1302 = vmul.f32 %v1294, %v1294
    %v1303 = vmul.f32 %v1299, %v1291
    %v1304 = vmul.f32 %v1300, %v1292
    %v1305 = vmul.f32 %v1301, %v1293
    %v1306 = vmul.f32 %v1302, %v1294
    %v1307 = vmul.f32 %v1303, 0.044715
    %v1308 = vmul.f32 %v1304, 0.044715
    %v1309 = vmul.f32 %v1305, 0.044715
    %v1310 = vmul.f32 %v1306, 0.044715
    %v1311 = vadd.f32 %v1291, %v1307
    %v1312 = vadd.f32 %v1292, %v1308
    %v1313 = vadd.f32 %v1293, %v1309
    %v1314 = vadd.f32 %v1294, %v1310
    %v1315 = vmul.f32 %v1311, 0.7978846
    %v1316 = vmul.f32 %v1312, 0.7978846
    %v1317 = vmul.f32 %v1313, 0.7978846
    %v1318 = vmul.f32 %v1314, 0.7978846
    %v1319 = vtanh.pop %v1315
    %v1320 = vtanh.pop %v1316
    %v1321 = vtanh.pop %v1317
    %v1322 = vtanh.pop %v1318
    %v1323 = vadd.f32 %v1319, 1.0
    %v1324 = vadd.f32 %v1320, 1.0
    %v1325 = vadd.f32 %v1321, 1.0
    %v1326 = vadd.f32 %v1322, 1.0
    %v1327 = vmul.f32 %v1295, %v1323
    %v1328 = vmul.f32 %v1296, %v1324
    %v1329 = vmul.f32 %v1297, %v1325
    %v1330 = vmul.f32 %v1298, %v1326
    %v1331 = vpack.c.bf16 %v1327, %v1327
    %v1332 = vpack.c.bf16 %v1328, %v1328
    %v1333 = vpack.c.bf16 %v1329, %v1329
    %v1334 = vpack.c.bf16 %v1330, %v1330
    %v1335 = vld [vmem:[#allocation7] sm:$0xf]
    %v1336 = vld [vmem:[#allocation7 + $0x4] sm:$0xf]
    %v1337 = vld [vmem:[#allocation7 + $0x8] sm:$0xf]
    %v1338 = vld [vmem:[#allocation7 + $0xc] sm:$0xf]
    %v1339 = vld [vmem:[#allocation7 + $0x10] sm:$0xf]
    %v1340 = vld [vmem:[#allocation7 + $0x14] sm:$0xf]
    %v1341 = vld [vmem:[#allocation7 + $0x18] sm:$0xf]
    %v1342 = vld [vmem:[#allocation7 + $0x1c] sm:$0xf]
    %v1343 = vld [vmem:[#allocation7 + $0x20] sm:$0xf]
    %v1344 = vld [vmem:[#allocation7 + $0x24] sm:$0xf]
    %v1345 = vld [vmem:[#allocation7 + $0x28] sm:$0xf]
    %v1346 = vld [vmem:[#allocation7 + $0x2c] sm:$0xf]
    %v1347 = vld [vmem:[#allocation7 + $0x30] sm:$0xf]
    %v1348 = vld [vmem:[#allocation7 + $0x34] sm:$0xf]
    %v1349 = vld [vmem:[#allocation7 + $0x38] sm:$0xf]
    %v1350 = vld [vmem:[#allocation7 + $0x3c] sm:$0xf]
    %v1351 = vld [vmem:[#allocation7 + $0x40] sm:$0xf]
    %v1352 = vld [vmem:[#allocation7 + $0x44] sm:$0xf]
    %v1353 = vld [vmem:[#allocation7 + $0x48] sm:$0xf]
    %v1354 = vld [vmem:[#allocation7 + $0x4c] sm:$0xf]
    %v1355 = vld [vmem:[#allocation7 + $0x50] sm:$0xf]
    %v1356 = vld [vmem:[#allocation7 + $0x54] sm:$0xf]
    %v1357 = vld [vmem:[#allocation7 + $0x58] sm:$0xf]
    %v1358 = vld [vmem:[#allocation7 + $0x5c] sm:$0xf]
    %v1359 = vld [vmem:[#allocation7 + $0x60] sm:$0xf]
    %v1360 = vld [vmem:[#allocation7 + $0x64] sm:$0xf]
    %v1361 = vld [vmem:[#allocation7 + $0x68] sm:$0xf]
    %v1362 = vld [vmem:[#allocation7 + $0x6c] sm:$0xf]
    %v1363 = vld [vmem:[#allocation7 + $0x70] sm:$0xf]
    %v1364 = vld [vmem:[#allocation7 + $0x74] sm:$0xf]
    %v1365 = vld [vmem:[#allocation7 + $0x78] sm:$0xf]
    %v1366 = vld [vmem:[#allocation7 + $0x7c] sm:$0xf]
    %v1367 = vld [vmem:[#allocation7 + $0x80] sm:$0xf]
    %v1368 = vld [vmem:[#allocation7 + $0x84] sm:$0xf]
    %v1369 = vld [vmem:[#allocation7 + $0x88] sm:$0xf]
    %v1370 = vld [vmem:[#allocation7 + $0x8c] sm:$0xf]
    %v1371 = vld [vmem:[#allocation7 + $0x90] sm:$0xf]
    %v1372 = vld [vmem:[#allocation7 + $0x94] sm:$0xf]
    %v1373 = vld [vmem:[#allocation7 + $0x98] sm:$0xf]
    %v1374 = vld [vmem:[#allocation7 + $0x9c] sm:$0xf]
    %v1375 = vld [vmem:[#allocation7 + $0xa0] sm:$0xf]
    %v1376 = vld [vmem:[#allocation7 + $0xa4] sm:$0xf]
    %v1377 = vld [vmem:[#allocation7 + $0xa8] sm:$0xf]
    %v1378 = vld [vmem:[#allocation7 + $0xac] sm:$0xf]
    %v1379 = vld [vmem:[#allocation7 + $0xb0] sm:$0xf]
    %v1380 = vld [vmem:[#allocation7 + $0xb4] sm:$0xf]
    %v1381 = vld [vmem:[#allocation7 + $0xb8] sm:$0xf]
    %v1382 = vld [vmem:[#allocation7 + $0xbc] sm:$0xf]
    %v1383 = vld [vmem:[#allocation7 + $0xc0] sm:$0xf]
    %v1384 = vld [vmem:[#allocation7 + $0xc4] sm:$0xf]
    %v1385 = vld [vmem:[#allocation7 + $0xc8] sm:$0xf]
    %v1386 = vld [vmem:[#allocation7 + $0xcc] sm:$0xf]
    %v1387 = vld [vmem:[#allocation7 + $0xd0] sm:$0xf]
    %v1388 = vld [vmem:[#allocation7 + $0xd4] sm:$0xf]
    %v1389 = vld [vmem:[#allocation7 + $0xd8] sm:$0xf]
    %v1390 = vld [vmem:[#allocation7 + $0xdc] sm:$0xf]
    %v1391 = vld [vmem:[#allocation7 + $0xe0] sm:$0xf]
    %v1392 = vld [vmem:[#allocation7 + $0xe4] sm:$0xf]
    %v1393 = vld [vmem:[#allocation7 + $0xe8] sm:$0xf]
    %v1394 = vld [vmem:[#allocation7 + $0xec] sm:$0xf]
    %v1395 = vld [vmem:[#allocation7 + $0xf0] sm:$0xf]
    %v1396 = vld [vmem:[#allocation7 + $0xf4] sm:$0xf]
    %v1397 = vld [vmem:[#allocation7 + $0xf8] sm:$0xf]
    %v1398 = vld [vmem:[#allocation7 + $0xfc] sm:$0xf]
    %v1463 = vunpack.c.l.b16 %v1335
    %v1464 = vunpack.c.l.b16 %v1336
    %v1465 = vunpack.c.l.b16 %v1337
    %v1466 = vunpack.c.l.b16 %v1338
    %v1467 = vunpack.c.l.b16 %v1339
    %v1468 = vunpack.c.l.b16 %v1340
    %v1469 = vunpack.c.l.b16 %v1341
    %v1470 = vunpack.c.l.b16 %v1342
    %v1471 = vunpack.c.l.b16 %v1343
    %v1472 = vunpack.c.l.b16 %v1344
    %v1473 = vunpack.c.l.b16 %v1345
    %v1474 = vunpack.c.l.b16 %v1346
    %v1475 = vunpack.c.l.b16 %v1347
    %v1476 = vunpack.c.l.b16 %v1348
    %v1477 = vunpack.c.l.b16 %v1349
    %v1478 = vunpack.c.l.b16 %v1350
    %v1479 = vunpack.c.l.b16 %v1351
    %v1480 = vunpack.c.l.b16 %v1352
    %v1481 = vunpack.c.l.b16 %v1353
    %v1482 = vunpack.c.l.b16 %v1354
    %v1483 = vunpack.c.l.b16 %v1355
    %v1484 = vunpack.c.l.b16 %v1356
    %v1485 = vunpack.c.l.b16 %v1357
    %v1486 = vunpack.c.l.b16 %v1358
    %v1487 = vunpack.c.l.b16 %v1359
    %v1488 = vunpack.c.l.b16 %v1360
    %v1489 = vunpack.c.l.b16 %v1361
    %v1490 = vunpack.c.l.b16 %v1362
    %v1491 = vunpack.c.l.b16 %v1363
    %v1492 = vunpack.c.l.b16 %v1364
    %v1493 = vunpack.c.l.b16 %v1365
    %v1494 = vunpack.c.l.b16 %v1366
    %v1495 = vunpack.c.l.b16 %v1367
    %v1496 = vunpack.c.l.b16 %v1368
    %v1497 = vunpack.c.l.b16 %v1369
    %v1498 = vunpack.c.l.b16 %v1370
    %v1499 = vunpack.c.l.b16 %v1371
    %v1500 = vunpack.c.l.b16 %v1372
    %v1501 = vunpack.c.l.b16 %v1373
    %v1502 = vunpack.c.l.b16 %v1374
    %v1503 = vunpack.c.l.b16 %v1375
    %v1504 = vunpack.c.l.b16 %v1376
    %v1505 = vunpack.c.l.b16 %v1377
    %v1506 = vunpack.c.l.b16 %v1378
    %v1507 = vunpack.c.l.b16 %v1379
    %v1508 = vunpack.c.l.b16 %v1380
    %v1509 = vunpack.c.l.b16 %v1381
    %v1510 = vunpack.c.l.b16 %v1382
    %v1511 = vunpack.c.l.b16 %v1383
    %v1512 = vunpack.c.l.b16 %v1384
    %v1513 = vunpack.c.l.b16 %v1385
    %v1514 = vunpack.c.l.b16 %v1386
    %v1515 = vunpack.c.l.b16 %v1387
    %v1516 = vunpack.c.l.b16 %v1388
    %v1517 = vunpack.c.l.b16 %v1389
    %v1518 = vunpack.c.l.b16 %v1390
    %v1519 = vunpack.c.l.b16 %v1391
    %v1520 = vunpack.c.l.b16 %v1392
    %v1521 = vunpack.c.l.b16 %v1393
    %v1522 = vunpack.c.l.b16 %v1394
    %v1523 = vunpack.c.l.b16 %v1395
    %v1524 = vunpack.c.l.b16 %v1396
    %v1525 = vunpack.c.l.b16 %v1397
    %v1526 = vunpack.c.l.b16 %v1398
    %v1527 = vpack.c.b16 %v1464, %v1463
    %v1528 = vpack.c.b16 %v1466, %v1465
    %v1529 = vpack.c.b16 %v1468, %v1467
    %v1530 = vpack.c.b16 %v1470, %v1469
    %v1531 = vpack.c.b16 %v1472, %v1471
    %v1532 = vpack.c.b16 %v1474, %v1473
    %v1533 = vpack.c.b16 %v1476, %v1475
    %v1534 = vpack.c.b16 %v1478, %v1477
    %v1535 = vpack.c.b16 %v1480, %v1479
    %v1536 = vpack.c.b16 %v1482, %v1481
    %v1537 = vpack.c.b16 %v1484, %v1483
    %v1538 = vpack.c.b16 %v1486, %v1485
    %v1539 = vpack.c.b16 %v1488, %v1487
    %v1540 = vpack.c.b16 %v1490, %v1489
    %v1541 = vpack.c.b16 %v1492, %v1491
    %v1542 = vpack.c.b16 %v1494, %v1493
    %v1543 = vpack.c.b16 %v1496, %v1495
    %v1544 = vpack.c.b16 %v1498, %v1497
    %v1545 = vpack.c.b16 %v1500, %v1499
    %v1546 = vpack.c.b16 %v1502, %v1501
    %v1547 = vpack.c.b16 %v1504, %v1503
    %v1548 = vpack.c.b16 %v1506, %v1505
    %v1549 = vpack.c.b16 %v1508, %v1507
    %v1550 = vpack.c.b16 %v1510, %v1509
    %v1551 = vpack.c.b16 %v1512, %v1511
    %v1552 = vpack.c.b16 %v1514, %v1513
    %v1553 = vpack.c.b16 %v1516, %v1515
    %v1554 = vpack.c.b16 %v1518, %v1517
    %v1555 = vpack.c.b16 %v1520, %v1519
    %v1556 = vpack.c.b16 %v1522, %v1521
    %v1557 = vpack.c.b16 %v1524, %v1523
    %v1558 = vpack.c.b16 %v1526, %v1525
    %1591 = vmatprep.subr.bf16.mxu0 0
    %1592 = vmatpush1.bf16.msra.mxu0 %v1534
    %1593 = vmatprep.subr.bf16.mxu0 0
    %1594 = vmatpush1.bf16.msra.mxu0 %v1533
    %1595 = vmatprep.subr.bf16.mxu0 0
    %1596 = vmatpush1.bf16.msra.mxu0 %v1532
    %1597 = vmatprep.subr.bf16.mxu0 0
    %1598 = vmatpush1.bf16.msra.mxu0 %v1531
    %1599 = vmatprep.subr.bf16.mxu0 0
    %1600 = vmatpush1.bf16.msra.mxu0 %v1530
    %1601 = vmatprep.subr.bf16.mxu0 0
    %1602 = vmatpush1.bf16.msra.mxu0 %v1529
    %1603 = vmatprep.subr.bf16.mxu0 0
    %1604 = vmatpush1.bf16.msra.mxu0 %v1528
    %1605 = vmatprep.subr.bf16.mxu0 0
    %1606 = vmatpush1.bf16.msra.mxu0 %v1527
    %1607 = vmatprep.subr.bf16.mxu0 0
    %1608 = vmatpush2.bf16.msra.mxu0 %v1542
    %1609 = vmatprep.subr.bf16.mxu0 0
    %1610 = vmatpush2.bf16.msra.mxu0 %v1541
    %1611 = vmatprep.subr.bf16.mxu0 0
    %1612 = vmatpush2.bf16.msra.mxu0 %v1540
    %1613 = vmatprep.subr.bf16.mxu0 0
    %1614 = vmatpush2.bf16.msra.mxu0 %v1539
    %1615 = vmatprep.subr.bf16.mxu0 0
    %1616 = vmatpush2.bf16.msra.mxu0 %v1538
    %1617 = vmatprep.subr.bf16.mxu0 0
    %1618 = vmatpush2.bf16.msra.mxu0 %v1537
    %1619 = vmatprep.subr.bf16.mxu0 0
    %1620 = vmatpush2.bf16.msra.mxu0 %v1536
    %1621 = vmatprep.subr.bf16.mxu0 0
    %1622 = vmatpush2.bf16.msra.mxu0 %v1535
    %1623 = vmatprep.mubr.bf16.mxu0 %v1332
    %1624 = vmatmul.mubr.bf16.gmra.mxu0 %v1331
    %v1625 = vpop.f32.mrf.mxu0
    %v1626 = vadd.f32 0.0, %v1625
    %v1627 = vpop.f32.mrf.mxu0
    %v1628 = vpop.f32.mrf.mxu0
    %v1629 = vpop.f32.mrf.mxu0
    %1630 = vdwg.mxu0
    %1631 = vmatprep.subr.bf16.mxu0 0
    %1632 = vmatpush1.bf16.msra.mxu0 %v1550
    %1633 = vmatprep.subr.bf16.mxu0 0
    %1634 = vmatpush1.bf16.msra.mxu0 %v1549
    %1635 = vmatprep.subr.bf16.mxu0 0
    %1636 = vmatpush1.bf16.msra.mxu0 %v1548
    %1637 = vmatprep.subr.bf16.mxu0 0
    %1638 = vmatpush1.bf16.msra.mxu0 %v1547
    %1639 = vmatprep.subr.bf16.mxu0 0
    %1640 = vmatpush1.bf16.msra.mxu0 %v1546
    %1641 = vmatprep.subr.bf16.mxu0 0
    %1642 = vmatpush1.bf16.msra.mxu0 %v1545
    %1643 = vmatprep.subr.bf16.mxu0 0
    %1644 = vmatpush1.bf16.msra.mxu0 %v1544
    %1645 = vmatprep.subr.bf16.mxu0 0
    %1646 = vmatpush1.bf16.msra.mxu0 %v1543
    %1647 = vmatprep.subr.bf16.mxu0 0
    %1648 = vmatpush2.bf16.msra.mxu0 %v1558
    %1649 = vmatprep.subr.bf16.mxu0 0
    %1650 = vmatpush2.bf16.msra.mxu0 %v1557
    %1651 = vmatprep.subr.bf16.mxu0 0
    %1652 = vmatpush2.bf16.msra.mxu0 %v1556
    %1653 = vmatprep.subr.bf16.mxu0 0
    %1654 = vmatpush2.bf16.msra.mxu0 %v1555
    %1655 = vmatprep.subr.bf16.mxu0 0
    %1656 = vmatpush2.bf16.msra.mxu0 %v1554
    %1657 = vmatprep.subr.bf16.mxu0 0
    %1658 = vmatpush2.bf16.msra.mxu0 %v1553
    %1659 = vmatprep.subr.bf16.mxu0 0
    %1660 = vmatpush2.bf16.msra.mxu0 %v1552
    %1661 = vmatprep.subr.bf16.mxu0 0
    %1662 = vmatpush2.bf16.msra.mxu0 %v1551
    %1663 = vmatprep.mubr.bf16.mxu0 %v1334
    %1664 = vmatmul.mubr.bf16.gmra.mxu0 %v1333
    %v1665 = vpop.f32.mrf.mxu0
    %v1666 = vadd.f32 %v1626, %v1665
    %v1667 = vpop.f32.mrf.mxu0
    %v1668 = vpop.f32.mrf.mxu0
    %v1669 = vpop.f32.mrf.mxu0
    %1670 = vdwg.mxu0
    %1671 = vst [vmem:[%s9] sm:$0xff] %v1666
    // Predicated region
    $region54: #{net_forward.1} parent=1 // pred_check
      _
    $region55: #{net_forward.1} parent=1 // pred_check_branch
      %1673 = sbr.rel (0) target = $region57
    $region56: #{net_forward.1} parent=1 // pred_region
      _
    $region57: #{net_forward.1} parent=1 // pred_fallthru
      _
    // Predicated region
    $region58: #{net_forward.1} parent=1 // pred_check
      _
    $region59: #{net_forward.1} parent=1 // pred_check_branch
      %1675 = sbr.rel (0) target = $region61
    $region60: #{net_forward.1} parent=1 // pred_region
      _
    $region61: #{net_forward.1} parent=1 // pred_fallthru
      _
    %1676 = vsyncpa [#allocation3], 1
    %1677 = vsyncpa [#allocation5], 1
    %1678 = vsyncpa [#allocation8], 1

</llo_original>
